<compile_context>
chip_gen: v5e
topology: v5e:2x2
jax: 0.10.0
libtpu: 0.0.40
codegen_flags: <defaults>
</compile_context>

<pallas_src>
import functools

import numpy as np
import jax
import jax.numpy as jnp
from jax import lax
from jax.experimental import pallas as pl
from jax.experimental.pallas import tpu as pltpu

LANE = 128   # lane width: one (batch, channel) pair per lane
LEFT = 8     # sublane-aligned left padding of the conv scratch buffers


def _ceil_to(v, m):
    return -(-v // m) * m


def _pick_rows(hc, wc, pad, budget):
    """Largest row-chunk in {8,4,2,1} dividing hc with <= budget vregs per window row-chunk."""
    wr = -(-(wc + 2 * pad) // 8)
    for r in (8, 4, 2, 1):
        if hc % r == 0 and r * wr <= budget:
            return r
    return 1


def _zero_border(ref, hc, wc, pad):
    """Zero the zero-padding border of a padded scratch buffer (interior untouched)."""
    hp = hc + 2 * pad
    wp = ref.shape[1]
    if pad > 0:
        zr = jnp.zeros((pad, wp, LANE), jnp.float32)
        ref[0:pad, :, :] = zr
        ref[pad + hc:hp, :, :] = zr
    ref[:, 0:LEFT, :] = jnp.zeros((hp, LEFT, LANE), jnp.float32)
    right = wp - LEFT - wc
    if right > 0:
        ref[:, LEFT + wc:wp, :] = jnp.zeros((hp, right, LANE), jnp.float32)


def _dwconv(src_ref, dst_ref, taps, bias, hc, wc, k, pad):
    """Depthwise kxk conv (stride 1, zero pad) between padded VMEM scratch buffers.

    taps: list of k*k values shaped (1,1,LANE); bias: (1,1,LANE).  Per row-chunk:
    k window loads (one per di) + static column shifts on the value + per-lane FMAs.
    """
    r_rows = _pick_rows(hc, wc, pad, budget=16)
    wr = wc + 2 * pad

    def body(ci, carry):
        r0 = ci * r_rows
        acc = jnp.broadcast_to(bias, (r_rows, wc, LANE))
        for di in range(k):
            win = src_ref[pl.ds(r0 + di, r_rows), LEFT - pad:LEFT - pad + wr, :]
            for dj in range(k):
                acc = acc + taps[di * k + dj] * win[:, dj:dj + wc, :]
        dst_ref[pl.ds(pad + r0, r_rows), LEFT:LEFT + wc, :] = acc
        return carry

    lax.fori_loop(0, hc // r_rows, body, 0)


def _maxpool(src_ref, dst_ref, hc, wc, pad):
    """MaxPool2d(2,2) from the interior of src to the interior of dst (both padded)."""
    ho, wo = hc // 2, wc // 2
    ro = _pick_rows(ho, wc, 0, budget=16)

    def body(ci, carry):
        r0 = ci * ro
        v = src_ref[pl.ds(pad + 2 * r0, 2 * ro), LEFT:LEFT + wc, :]
        v = v.reshape(ro, 2, wc, LANE)
        vh = jnp.maximum(v[:, 0], v[:, 1])
        vp = vh.reshape(ro, wo, 2, LANE)
        dst_ref[pl.ds(pad + r0, ro), LEFT:LEFT + wo, :] = jnp.maximum(vp[:, :, 0, :],
                                                                      vp[:, :, 1, :])
        return carry

    lax.fori_loop(0, ho // ro, body, 0)


def _global_mean(src_ref, hc, wc, pad):
    """AdaptiveAvgPool2d((1,1)) over the interior of a padded buffer -> (1, LANE)."""
    r_rows = _pick_rows(hc, wc, 0, budget=16)

    def body(ci, tot):
        rows = src_ref[pl.ds(pad + ci * r_rows, r_rows), LEFT:LEFT + wc, :]
        return tot + jnp.sum(rows, axis=0).sum(axis=0, keepdims=True)

    tot = lax.fori_loop(0, hc // r_rows, body, jnp.zeros((1, LANE), jnp.float32))
    return tot * (1.0 / (hc * wc))


def _feature_kernel(x_ref, w1_ref, b1_ref, w2_ref, b2_ref, g_ref,
                    pbA, pbB, pcA, pcB, *, k, S2, NS, H2, W2, H4, W4):
    kk = k * k
    pad = k // 2
    f32 = jnp.float32
    s = pl.program_id(1)

    # Zero the conv zero-padding borders once per lane tile (per core); the interiors
    # are always fully overwritten before they are read, borders are never written.
    @pl.when(s == 0)
    def _zero():
        _zero_border(pbA, H2, W2, pad)
        _zero_border(pbB, H2, W2, pad)
        _zero_border(pcA, H4, W4, pad)
        _zero_border(pcB, H4, W4, pad)

    # --- AvgPool2d(2,2) of this bf16 input strip -> pbA interior ------------------
    row0 = pad + s * S2
    for r in range(S2):
        v = x_ref[pl.ds(2 * r, 2), :, :, :]                       # (2, 2, W2, LANE) bf16
        avg = 0.25 * (v[0, 0].astype(f32) + v[0, 1].astype(f32)
                      + v[1, 0].astype(f32) + v[1, 1].astype(f32))
        pbA[pl.ds(row0 + r, 1), LEFT:LEFT + W2, :] = avg.reshape(1, W2, LANE)

    # --- On the last strip: Block1 -> maxpool -> Block2 -> global mean ------------
    @pl.when(s == NS - 1)
    def _compute():
        w1 = w1_ref[...]            # (3*kk, LANE) per-lane tap weights
        b1 = b1_ref[...]            # (3, LANE)
        w2 = w2_ref[...]
        b2 = b2_ref[...]

        bufs1 = (pbA, pbB)
        src = 0
        for i in range(3):
            taps = [w1[i * kk + t].reshape(1, 1, LANE) for t in range(kk)]
            bias = b1[i].reshape(1, 1, LANE)
            _dwconv(bufs1[src], bufs1[1 - src], taps, bias, H2, W2, k, pad)
            src = 1 - src

        _maxpool(bufs1[src], pcA, H2, W2, pad)

        bufs2 = (pcA, pcB)
        src = 0
        for i in range(3):
            taps = [w2[i * kk + t].reshape(1, 1, LANE) for t in range(kk)]
            bias = b2[i].reshape(1, 1, LANE)
            _dwconv(bufs2[src], bufs2[1 - src], taps, bias, H4, W4, k, pad)
            src = 1 - src

        g_ref[...] = _global_mean(bufs2[src], H4, W4, pad)


@functools.partial(jax.jit, static_argnums=2)
def dynamic_dw_conv_weight(x, params, k):
    B, C, H, W = x.shape
    assert H % 4 == 0 and W % 4 == 0, "kernel assumes H, W divisible by 4 (two 2x2 pools)"
    assert k % 2 == 1 and k <= 17, "odd kernel size assumed ('same' padding)"
    kk = k * k
    pad = k // 2
    H2, W2, H4, W4 = H // 2, W // 2, H // 4, W // 4
    NBC = B * C
    T = -(-NBC // LANE)
    NBCp = T * LANE                 # lane axis always padded to a multiple of 128
    S2 = 8 if H2 % 8 == 0 else H2   # strip size in avg-pooled (H/2) rows
    NS = H2 // S2

    # ---- input: NCHW -> (T, H, 2, W2, 128) bf16, lane = b*C + c, blocks contiguous ----
    xb = jnp.transpose(x.astype(jnp.bfloat16), (2, 3, 0, 1)).reshape(H, W, NBC)
    if NBCp != NBC:
        xb = jnp.pad(xb, ((0, 0), (0, 0), (0, NBCp - NBC)))
    xb = jnp.transpose(xb.reshape(H, W2, 2, NBCp), (0, 2, 1, 3))       # (H, 2, W2, NBCp)
    xb = jnp.transpose(xb.reshape(H, 2, W2, T, LANE), (3, 0, 1, 2, 4))  # (T, H, 2, W2, 128)

    def lanes(a2d):   # (rows, C) per-channel -> (rows, NBCp) per-lane (tiled over batch)
        t = jnp.tile(a2d.astype(jnp.float32), (1, B))
        if NBCp != NBC:
            t = jnp.pad(t, ((0, 0), (0, NBCp - NBC)))
        return t

    # Depthwise weights (3, C, 1, k, k) -> (3*kk, NBCp): row i*kk + di*k + dj holds the
    # per-channel tap weight, tiled across batch along the lane axis.
    w1 = lanes(jnp.transpose(params["b1w"].reshape(3, C, kk), (0, 2, 1)).reshape(3 * kk, C))
    b1 = lanes(params["b1b"].reshape(3, C))
    w2 = lanes(jnp.transpose(params["b2w"].reshape(3, C, kk), (0, 2, 1)).reshape(3 * kk, C))
    b2 = lanes(params["b2b"].reshape(3, C))

    WP2 = LEFT + _ceil_to(W2 + pad, 8)
    WP4 = LEFT + _ceil_to(W4 + pad, 8)

    scratch_bytes = ((H2 + 2 * pad) * WP2 * 2 + (H4 + 2 * pad) * WP4 * 2) * LANE * 4
    block_bytes = (2 * (2 * S2) * 2 * W2 * LANE * 2          # double-buffered bf16 x strip
                   + 2 * 2 * (3 * kk + 3) * LANE * 4         # weight / bias blocks
                   + 2 * LANE * 4)                           # output block
    vmem_limit = min(int(1.4 * (scratch_bytes + block_bytes)) + (4 << 20), 100 << 20)

    conv_flops = 2 * kk * 3 * (H2 * W2 + H4 * W4) * NBCp
    pool_flops = (4 * H2 * W2 + 3 * H4 * W4) * NBCp
    bytes_acc = xb.size * 2 + (w1.size + b1.size + w2.size + b2.size + NBCp) * 4

    kern = functools.partial(_feature_kernel, k=k, S2=S2, NS=NS,
                             H2=H2, W2=W2, H4=H4, W4=W4)

    g = pl.pallas_call(
        kern,
        grid=(T, NS),
        in_specs=[
            pl.BlockSpec((None, 2 * S2, 2, W2, LANE), lambda t, s: (t, s, 0, 0, 0)),
            pl.BlockSpec((3 * kk, LANE), lambda t, s: (0, t)),
            pl.BlockSpec((3, LANE), lambda t, s: (0, t)),
            pl.BlockSpec((3 * kk, LANE), lambda t, s: (0, t)),
            pl.BlockSpec((3, LANE), lambda t, s: (0, t)),
        ],
        out_specs=pl.BlockSpec((1, LANE), lambda t, s: (0, t)),
        out_shape=jax.ShapeDtypeStruct((1, NBCp), jnp.float32),
        scratch_shapes=[
            pltpu.VMEM((H2 + 2 * pad, WP2, LANE), jnp.float32),   # Block1 ping (padded)
            pltpu.VMEM((H2 + 2 * pad, WP2, LANE), jnp.float32),   # Block1 pong (padded)
            pltpu.VMEM((H4 + 2 * pad, WP4, LANE), jnp.float32),   # Block2 ping (padded)
            pltpu.VMEM((H4 + 2 * pad, WP4, LANE), jnp.float32),   # Block2 pong (padded)
        ],
        compiler_params=pltpu.CompilerParams(
            dimension_semantics=("parallel", "arbitrary"),
            vmem_limit_bytes=vmem_limit),
        cost_estimate=pl.CostEstimate(flops=conv_flops + pool_flops,
                                      transcendentals=0,
                                      bytes_accessed=bytes_acc),
    )(xb, w1, b1, w2, b2)

    # tokernel: 1x1 conv on the pooled (B, C) vectors == tiny dense contraction.
    gv = g[0, :NBC].reshape(B, C)
    wk = params["tkw"].reshape(kk * C, C).astype(jnp.float32)
    out = jnp.dot(gv, wk.T, precision=lax.Precision.HIGHEST) \
        + params["tkb"].astype(jnp.float32)[None, :]

    # Same flattening order as torch's weight.view(b * channels, 1, k, k).
    return out.reshape(B * C, 1, k, k)


# ----------------------------------------------------------------------------
# Pure-JAX reference (mirrors the PyTorch forward) for correctness checking.
# ----------------------------------------------------------------------------
def reference(x, params, k):
    B, C, H, W = x.shape
    pad = k // 2

    def dw(v, w, b):
        o = lax.conv_general_dilated(
            v, w, (1, 1), [(pad, pad), (pad, pad)],
            dimension_numbers=("NCHW", "OIHW", "NCHW"),
            feature_group_count=C, precision=lax.Precision.HIGHEST)
        return o + b[None, :, None, None]

    y = lax.reduce_window(x, 0.0, lax.add, (1, 1, 2, 2), (1, 1, 2, 2), "VALID") * 0.25
    for i in range(3):
        y = dw(y, params["b1w"][i], params["b1b"][i])
    y = lax.reduce_window(y, -jnp.inf, lax.max, (1, 1, 2, 2), (1, 1, 2, 2), "VALID")
    for i in range(3):
        y = dw(y, params["b2w"][i], params["b2b"][i])
    g = jnp.mean(y, axis=(2, 3), keepdims=True)
    w = lax.conv_general_dilated(
        g, params["tkw"], (1, 1), "VALID",
        dimension_numbers=("NCHW", "OIHW", "NCHW"),
        precision=lax.Precision.HIGHEST)
    w = w + params["tkb"][None, :, None, None]
    return w.reshape(B * C, 1, k, k)


if __name__ == "__main__":
    B, C, H, W, K = 2, 4, 16, 16, 3

    key = jax.random.PRNGKey(0)
    k1, k2, k3, k4, k5, k6, kx = jax.random.split(key, 7)
    bd = 1.0 / K                     # ~ kaiming-uniform bound for depthwise kxk conv
    bt = 1.0 / (C ** 0.5)            # ~ bound for the 1x1 tokernel conv
    params = dict(
        b1w=jax.random.uniform(k1, (3, C, 1, K, K), jnp.float32, -bd, bd),
        b1b=jax.random.uniform(k2, (3, C), jnp.float32, -bd, bd),
        b2w=jax.random.uniform(k3, (3, C, 1, K, K), jnp.float32, -bd, bd),
        b2b=jax.random.uniform(k4, (3, C), jnp.float32, -bd, bd),
        tkw=jax.random.uniform(k5, (K * K * C, C, 1, 1), jnp.float32, -bt, bt),
        tkb=jax.random.uniform(k6, (K * K * C,), jnp.float32, -bt, bt),
    )
    # TODO(synk): self.bias (nn.Parameter) / stride / groups are defined in __init__
    # but never used by forward(), so they are intentionally not part of the kernel.

    x = jax.random.normal(kx, (B, C, H, W), jnp.float32)

    out = jax.block_until_ready(dynamic_dw_conv_weight(x, params, K))

    # The kernel streams x as bf16; compare against a reference fed the same
    # bf16-quantized input (all downstream math is f32 in both).
    xq = x.astype(jnp.bfloat16).astype(jnp.float32)
    ref = jax.block_until_ready(reference(xq, params, K))

    assert out.shape == (B * C, 1, K, K)
    np.testing.assert_allclose(np.asarray(out), np.asarray(ref), rtol=1e-3, atol=1e-4)
    print("KERNEL_OK")
</pallas_src>

<mosaic_0001>
module attributes {stable_mosaic.version = 11 : i64} {
  func.func @_feature_kernel(%arg0: i32, %arg1: i32, %arg2: memref<1x16x2x8x128xbf16, #tpu.memory_space<vmem>>, %arg3: memref<27x128xf32, #tpu.memory_space<vmem>>, %arg4: memref<3x128xf32, #tpu.memory_space<vmem>>, %arg5: memref<27x128xf32, #tpu.memory_space<vmem>>, %arg6: memref<3x128xf32, #tpu.memory_space<vmem>>, %arg7: memref<1x128xf32, #tpu.memory_space<vmem>>, %arg8: memref<10x24x128xf32, #tpu.memory_space<vmem>>, %arg9: memref<10x24x128xf32, #tpu.memory_space<vmem>>, %arg10: memref<6x16x128xf32, #tpu.memory_space<vmem>>, %arg11: memref<6x16x128xf32, #tpu.memory_space<vmem>>) attributes {dimension_semantics = [#tpu.dimension_semantics<parallel>, #tpu.dimension_semantics<arbitrary>], iteration_bounds = array<i64: 1, 1>, scalar_prefetch = 0 : i64, scratch_operands = 4 : i64, tpu.core_type = #tpu.core_type<tc>, window_params = [{transform_indices = @transform_0, window_bounds = array<i64: 1, 16, 2, 8, 128>}, {transform_indices = @transform_1, window_bounds = array<i64: 27, 128>}, {transform_indices = @transform_2, window_bounds = array<i64: 3, 128>}, {transform_indices = @transform_3, window_bounds = array<i64: 27, 128>}, {transform_indices = @transform_4, window_bounds = array<i64: 3, 128>}, {transform_indices = @transform_5, window_bounds = array<i64: 1, 128>}]} {
    %c0_i32 = arith.constant 0 : i32
    %0 = arith.cmpi eq, %arg1, %c0_i32 : i32
    %1 = arith.extui %0 : i1 to i32
    %c0_i32_0 = arith.constant 0 : i32
    %2 = arith.cmpi ne, %1, %c0_i32_0 : i32
    scf.if %2 {
      %cst_60 = arith.constant 0.000000e+00 : f32
      %192 = vector.broadcast %cst_60 : f32 to vector<1x24x128xf32>
      %c0_61 = arith.constant 0 : index
      %c0_62 = arith.constant 0 : index
      %c0_63 = arith.constant 0 : index
      %193 = vector.load %arg8[%c0_61, %c0_62, %c0_63] : memref<10x24x128xf32, #tpu.memory_space<vmem>>, vector<1x24x128xf32>
      tpu.vector_store %arg8[%c0_61, %c0_62, %c0_63], %192 {strides = array<i32>} : memref<10x24x128xf32, #tpu.memory_space<vmem>>, vector<1x24x128xf32>,
      %c9 = arith.constant 9 : index
      %c0_64 = arith.constant 0 : index
      %c0_65 = arith.constant 0 : index
      %194 = vector.load %arg8[%c9, %c0_64, %c0_65] : memref<10x24x128xf32, #tpu.memory_space<vmem>>, vector<1x24x128xf32>
      tpu.vector_store %arg8[%c9, %c0_64, %c0_65], %192 {strides = array<i32>} : memref<10x24x128xf32, #tpu.memory_space<vmem>>, vector<1x24x128xf32>,
      %cst_66 = arith.constant 0.000000e+00 : f32
      %195 = vector.broadcast %cst_66 : f32 to vector<10x8x128xf32>
      %c0_67 = arith.constant 0 : index
      %c0_68 = arith.constant 0 : index
      %c0_69 = arith.constant 0 : index
      %196 = vector.load %arg8[%c0_67, %c0_68, %c0_69] : memref<10x24x128xf32, #tpu.memory_space<vmem>>, vector<10x8x128xf32>
      tpu.vector_store %arg8[%c0_67, %c0_68, %c0_69], %195 {strides = array<i32>} : memref<10x24x128xf32, #tpu.memory_space<vmem>>, vector<10x8x128xf32>,
      %cst_70 = arith.constant 0.000000e+00 : f32
      %197 = vector.broadcast %cst_70 : f32 to vector<10x8x128xf32>
      %c0_71 = arith.constant 0 : index
      %c16 = arith.constant 16 : index
      %c0_72 = arith.constant 0 : index
      %198 = vector.load %arg8[%c0_71, %c16, %c0_72] : memref<10x24x128xf32, #tpu.memory_space<vmem>>, vector<10x8x128xf32>
      tpu.vector_store %arg8[%c0_71, %c16, %c0_72], %197 {strides = array<i32>} : memref<10x24x128xf32, #tpu.memory_space<vmem>>, vector<10x8x128xf32>,
      %cst_73 = arith.constant 0.000000e+00 : f32
      %199 = vector.broadcast %cst_73 : f32 to vector<1x24x128xf32>
      %c0_74 = arith.constant 0 : index
      %c0_75 = arith.constant 0 : index
      %c0_76 = arith.constant 0 : index
      %200 = vector.load %arg9[%c0_74, %c0_75, %c0_76] : memref<10x24x128xf32, #tpu.memory_space<vmem>>, vector<1x24x128xf32>
      tpu.vector_store %arg9[%c0_74, %c0_75, %c0_76], %199 {strides = array<i32>} : memref<10x24x128xf32, #tpu.memory_space<vmem>>, vector<1x24x128xf32>,
      %c9_77 = arith.constant 9 : index
      %c0_78 = arith.constant 0 : index
      %c0_79 = arith.constant 0 : index
      %201 = vector.load %arg9[%c9_77, %c0_78, %c0_79] : memref<10x24x128xf32, #tpu.memory_space<vmem>>, vector<1x24x128xf32>
      tpu.vector_store %arg9[%c9_77, %c0_78, %c0_79], %199 {strides = array<i32>} : memref<10x24x128xf32, #tpu.memory_space<vmem>>, vector<1x24x128xf32>,
      %cst_80 = arith.constant 0.000000e+00 : f32
      %202 = vector.broadcast %cst_80 : f32 to vector<10x8x128xf32>
      %c0_81 = arith.constant 0 : index
      %c0_82 = arith.constant 0 : index
      %c0_83 = arith.constant 0 : index
      %203 = vector.load %arg9[%c0_81, %c0_82, %c0_83] : memref<10x24x128xf32, #tpu.memory_space<vmem>>, vector<10x8x128xf32>
      tpu.vector_store %arg9[%c0_81, %c0_82, %c0_83], %202 {strides = array<i32>} : memref<10x24x128xf32, #tpu.memory_space<vmem>>, vector<10x8x128xf32>,
      %cst_84 = arith.constant 0.000000e+00 : f32
      %204 = vector.broadcast %cst_84 : f32 to vector<10x8x128xf32>
      %c0_85 = arith.constant 0 : index
      %c16_86 = arith.constant 16 : index
      %c0_87 = arith.constant 0 : index
      %205 = vector.load %arg9[%c0_85, %c16_86, %c0_87] : memref<10x24x128xf32, #tpu.memory_space<vmem>>, vector<10x8x128xf32>
      tpu.vector_store %arg9[%c0_85, %c16_86, %c0_87], %204 {strides = array<i32>} : memref<10x24x128xf32, #tpu.memory_space<vmem>>, vector<10x8x128xf32>,
      %cst_88 = arith.constant 0.000000e+00 : f32
      %206 = vector.broadcast %cst_88 : f32 to vector<1x16x128xf32>
      %c0_89 = arith.constant 0 : index
      %c0_90 = arith.constant 0 : index
      %c0_91 = arith.constant 0 : index
      %207 = vector.load %arg10[%c0_89, %c0_90, %c0_91] : memref<6x16x128xf32, #tpu.memory_space<vmem>>, vector<1x16x128xf32>
      tpu.vector_store %arg10[%c0_89, %c0_90, %c0_91], %206 {strides = array<i32>} : memref<6x16x128xf32, #tpu.memory_space<vmem>>, vector<1x16x128xf32>,
      %c5 = arith.constant 5 : index
      %c0_92 = arith.constant 0 : index
      %c0_93 = arith.constant 0 : index
      %208 = vector.load %arg10[%c5, %c0_92, %c0_93] : memref<6x16x128xf32, #tpu.memory_space<vmem>>, vector<1x16x128xf32>
      tpu.vector_store %arg10[%c5, %c0_92, %c0_93], %206 {strides = array<i32>} : memref<6x16x128xf32, #tpu.memory_space<vmem>>, vector<1x16x128xf32>,
      %cst_94 = arith.constant 0.000000e+00 : f32
      %209 = vector.broadcast %cst_94 : f32 to vector<6x8x128xf32>
      %c0_95 = arith.constant 0 : index
      %c0_96 = arith.constant 0 : index
      %c0_97 = arith.constant 0 : index
      %210 = vector.load %arg10[%c0_95, %c0_96, %c0_97] : memref<6x16x128xf32, #tpu.memory_space<vmem>>, vector<6x8x128xf32>
      tpu.vector_store %arg10[%c0_95, %c0_96, %c0_97], %209 {strides = array<i32>} : memref<6x16x128xf32, #tpu.memory_space<vmem>>, vector<6x8x128xf32>,
      %cst_98 = arith.constant 0.000000e+00 : f32
      %211 = vector.broadcast %cst_98 : f32 to vector<6x4x128xf32>
      %c0_99 = arith.constant 0 : index
      %c12_100 = arith.constant 12 : index
      %c0_101 = arith.constant 0 : index
      %212 = vector.load %arg10[%c0_99, %c12_100, %c0_101] : memref<6x16x128xf32, #tpu.memory_space<vmem>>, vector<6x4x128xf32>
      tpu.vector_store %arg10[%c0_99, %c12_100, %c0_101], %211 {strides = array<i32>} : memref<6x16x128xf32, #tpu.memory_space<vmem>>, vector<6x4x128xf32>,
      %cst_102 = arith.constant 0.000000e+00 : f32
      %213 = vector.broadcast %cst_102 : f32 to vector<1x16x128xf32>
      %c0_103 = arith.constant 0 : index
      %c0_104 = arith.constant 0 : index
      %c0_105 = arith.constant 0 : index
      %214 = vector.load %arg11[%c0_103, %c0_104, %c0_105] : memref<6x16x128xf32, #tpu.memory_space<vmem>>, vector<1x16x128xf32>
      tpu.vector_store %arg11[%c0_103, %c0_104, %c0_105], %213 {strides = array<i32>} : memref<6x16x128xf32, #tpu.memory_space<vmem>>, vector<1x16x128xf32>,
      %c5_106 = arith.constant 5 : index
      %c0_107 = arith.constant 0 : index
      %c0_108 = arith.constant 0 : index
      %215 = vector.load %arg11[%c5_106, %c0_107, %c0_108] : memref<6x16x128xf32, #tpu.memory_space<vmem>>, vector<1x16x128xf32>
      tpu.vector_store %arg11[%c5_106, %c0_107, %c0_108], %213 {strides = array<i32>} : memref<6x16x128xf32, #tpu.memory_space<vmem>>, vector<1x16x128xf32>,
      %cst_109 = arith.constant 0.000000e+00 : f32
      %216 = vector.broadcast %cst_109 : f32 to vector<6x8x128xf32>
      %c0_110 = arith.constant 0 : index
      %c0_111 = arith.constant 0 : index
      %c0_112 = arith.constant 0 : index
      %217 = vector.load %arg11[%c0_110, %c0_111, %c0_112] : memref<6x16x128xf32, #tpu.memory_space<vmem>>, vector<6x8x128xf32>
      tpu.vector_store %arg11[%c0_110, %c0_111, %c0_112], %216 {strides = array<i32>} : memref<6x16x128xf32, #tpu.memory_space<vmem>>, vector<6x8x128xf32>,
      %cst_113 = arith.constant 0.000000e+00 : f32
      %218 = vector.broadcast %cst_113 : f32 to vector<6x4x128xf32>
      %c0_114 = arith.constant 0 : index
      %c12_115 = arith.constant 12 : index
      %c0_116 = arith.constant 0 : index
      %219 = vector.load %arg11[%c0_114, %c12_115, %c0_116] : memref<6x16x128xf32, #tpu.memory_space<vmem>>, vector<6x4x128xf32>
      tpu.vector_store %arg11[%c0_114, %c12_115, %c0_116], %218 {strides = array<i32>} : memref<6x16x128xf32, #tpu.memory_space<vmem>>, vector<6x4x128xf32>,
    } else {
    }
    %c8_i32 = arith.constant 8 : i32
    %3 = arith.muli %arg1, %c8_i32 : i32
    %c1_i32 = arith.constant 1 : i32
    %4 = arith.addi %c1_i32, %3 : i32
    %c0 = arith.constant 0 : index
    %c0_1 = arith.constant 0 : index
    %c0_2 = arith.constant 0 : index
    %c0_3 = arith.constant 0 : index
    %c0_4 = arith.constant 0 : index
    %5 = vector.load %arg2[%c0, %c0_1, %c0_2, %c0_3, %c0_4] : memref<1x16x2x8x128xbf16, #tpu.memory_space<vmem>>, vector<1x2x2x8x128xbf16>
    %6 = vector.shape_cast %5 : vector<1x2x2x8x128xbf16> to vector<2x2x8x128xbf16>
    %7 = vector.extract_strided_slice %6 {offsets = [0, 0, 0, 0], sizes = [1, 1, 8, 128], strides = [1, 1, 1, 1]} : vector<2x2x8x128xbf16> to vector<1x1x8x128xbf16>
    %8 = vector.shape_cast %7 : vector<1x1x8x128xbf16> to vector<8x128xbf16>
    %9 = arith.extf %8 : vector<8x128xbf16> to vector<8x128xf32>
    %10 = vector.extract_strided_slice %6 {offsets = [0, 1, 0, 0], sizes = [1, 1, 8, 128], strides = [1, 1, 1, 1]} : vector<2x2x8x128xbf16> to vector<1x1x8x128xbf16>
    %11 = vector.shape_cast %10 : vector<1x1x8x128xbf16> to vector<8x128xbf16>
    %12 = arith.extf %11 : vector<8x128xbf16> to vector<8x128xf32>
    %13 = arith.addf %9, %12 : vector<8x128xf32>
    %14 = vector.extract_strided_slice %6 {offsets = [1, 0, 0, 0], sizes = [1, 1, 8, 128], strides = [1, 1, 1, 1]} : vector<2x2x8x128xbf16> to vector<1x1x8x128xbf16>
    %15 = vector.shape_cast %14 : vector<1x1x8x128xbf16> to vector<8x128xbf16>
    %16 = arith.extf %15 : vector<8x128xbf16> to vector<8x128xf32>
    %17 = arith.addf %13, %16 : vector<8x128xf32>
    %18 = vector.extract_strided_slice %6 {offsets = [1, 1, 0, 0], sizes = [1, 1, 8, 128], strides = [1, 1, 1, 1]} : vector<2x2x8x128xbf16> to vector<1x1x8x128xbf16>
    %19 = vector.shape_cast %18 : vector<1x1x8x128xbf16> to vector<8x128xbf16>
    %20 = arith.extf %19 : vector<8x128xbf16> to vector<8x128xf32>
    %21 = arith.addf %17, %20 : vector<8x128xf32>
    %cst = arith.constant 2.500000e-01 : f32
    %22 = vector.broadcast %cst : f32 to vector<8x128xf32>
    %23 = arith.mulf %22, %21 : vector<8x128xf32>
    %24 = vector.shape_cast %23 : vector<8x128xf32> to vector<1x8x128xf32>
    %c0_i32_5 = arith.constant 0 : i32
    %25 = arith.addi %4, %c0_i32_5 : i32
    %26 = arith.index_cast %25 : i32 to index
    %c8 = arith.constant 8 : index
    %c0_6 = arith.constant 0 : index
    %27 = vector.load %arg8[%26, %c8, %c0_6] : memref<10x24x128xf32, #tpu.memory_space<vmem>>, vector<1x8x128xf32>
    tpu.vector_store %arg8[%26, %c8, %c0_6], %24 {strides = array<i32>} : memref<10x24x128xf32, #tpu.memory_space<vmem>>, vector<1x8x128xf32>,
    %c0_7 = arith.constant 0 : index
    %c2 = arith.constant 2 : index
    %c0_8 = arith.constant 0 : index
    %c0_9 = arith.constant 0 : index
    %c0_10 = arith.constant 0 : index
    %28 = vector.load %arg2[%c0_7, %c2, %c0_8, %c0_9, %c0_10] : memref<1x16x2x8x128xbf16, #tpu.memory_space<vmem>>, vector<1x2x2x8x128xbf16>
    %29 = vector.shape_cast %28 : vector<1x2x2x8x128xbf16> to vector<2x2x8x128xbf16>
    %30 = vector.extract_strided_slice %29 {offsets = [0, 0, 0, 0], sizes = [1, 1, 8, 128], strides = [1, 1, 1, 1]} : vector<2x2x8x128xbf16> to vector<1x1x8x128xbf16>
    %31 = vector.shape_cast %30 : vector<1x1x8x128xbf16> to vector<8x128xbf16>
    %32 = arith.extf %31 : vector<8x128xbf16> to vector<8x128xf32>
    %33 = vector.extract_strided_slice %29 {offsets = [0, 1, 0, 0], sizes = [1, 1, 8, 128], strides = [1, 1, 1, 1]} : vector<2x2x8x128xbf16> to vector<1x1x8x128xbf16>
    %34 = vector.shape_cast %33 : vector<1x1x8x128xbf16> to vector<8x128xbf16>
    %35 = arith.extf %34 : vector<8x128xbf16> to vector<8x128xf32>
    %36 = arith.addf %32, %35 : vector<8x128xf32>
    %37 = vector.extract_strided_slice %29 {offsets = [1, 0, 0, 0], sizes = [1, 1, 8, 128], strides = [1, 1, 1, 1]} : vector<2x2x8x128xbf16> to vector<1x1x8x128xbf16>
    %38 = vector.shape_cast %37 : vector<1x1x8x128xbf16> to vector<8x128xbf16>
    %39 = arith.extf %38 : vector<8x128xbf16> to vector<8x128xf32>
    %40 = arith.addf %36, %39 : vector<8x128xf32>
    %41 = vector.extract_strided_slice %29 {offsets = [1, 1, 0, 0], sizes = [1, 1, 8, 128], strides = [1, 1, 1, 1]} : vector<2x2x8x128xbf16> to vector<1x1x8x128xbf16>
    %42 = vector.shape_cast %41 : vector<1x1x8x128xbf16> to vector<8x128xbf16>
    %43 = arith.extf %42 : vector<8x128xbf16> to vector<8x128xf32>
    %44 = arith.addf %40, %43 : vector<8x128xf32>
    %cst_11 = arith.constant 2.500000e-01 : f32
    %45 = vector.broadcast %cst_11 : f32 to vector<8x128xf32>
    %46 = arith.mulf %45, %44 : vector<8x128xf32>
    %47 = vector.shape_cast %46 : vector<8x128xf32> to vector<1x8x128xf32>
    %c1_i32_12 = arith.constant 1 : i32
    %48 = arith.addi %4, %c1_i32_12 : i32
    %49 = arith.index_cast %48 : i32 to index
    %c8_13 = arith.constant 8 : index
    %c0_14 = arith.constant 0 : index
    %50 = vector.load %arg8[%49, %c8_13, %c0_14] : memref<10x24x128xf32, #tpu.memory_space<vmem>>, vector<1x8x128xf32>
    tpu.vector_store %arg8[%49, %c8_13, %c0_14], %47 {strides = array<i32>} : memref<10x24x128xf32, #tpu.memory_space<vmem>>, vector<1x8x128xf32>,
    %c0_15 = arith.constant 0 : index
    %c4 = arith.constant 4 : index
    %c0_16 = arith.constant 0 : index
    %c0_17 = arith.constant 0 : index
    %c0_18 = arith.constant 0 : index
    %51 = vector.load %arg2[%c0_15, %c4, %c0_16, %c0_17, %c0_18] : memref<1x16x2x8x128xbf16, #tpu.memory_space<vmem>>, vector<1x2x2x8x128xbf16>
    %52 = vector.shape_cast %51 : vector<1x2x2x8x128xbf16> to vector<2x2x8x128xbf16>
    %53 = vector.extract_strided_slice %52 {offsets = [0, 0, 0, 0], sizes = [1, 1, 8, 128], strides = [1, 1, 1, 1]} : vector<2x2x8x128xbf16> to vector<1x1x8x128xbf16>
    %54 = vector.shape_cast %53 : vector<1x1x8x128xbf16> to vector<8x128xbf16>
    %55 = arith.extf %54 : vector<8x128xbf16> to vector<8x128xf32>
    %56 = vector.extract_strided_slice %52 {offsets = [0, 1, 0, 0], sizes = [1, 1, 8, 128], strides = [1, 1, 1, 1]} : vector<2x2x8x128xbf16> to vector<1x1x8x128xbf16>
    %57 = vector.shape_cast %56 : vector<1x1x8x128xbf16> to vector<8x128xbf16>
    %58 = arith.extf %57 : vector<8x128xbf16> to vector<8x128xf32>
    %59 = arith.addf %55, %58 : vector<8x128xf32>
    %60 = vector.extract_strided_slice %52 {offsets = [1, 0, 0, 0], sizes = [1, 1, 8, 128], strides = [1, 1, 1, 1]} : vector<2x2x8x128xbf16> to vector<1x1x8x128xbf16>
    %61 = vector.shape_cast %60 : vector<1x1x8x128xbf16> to vector<8x128xbf16>
    %62 = arith.extf %61 : vector<8x128xbf16> to vector<8x128xf32>
    %63 = arith.addf %59, %62 : vector<8x128xf32>
    %64 = vector.extract_strided_slice %52 {offsets = [1, 1, 0, 0], sizes = [1, 1, 8, 128], strides = [1, 1, 1, 1]} : vector<2x2x8x128xbf16> to vector<1x1x8x128xbf16>
    %65 = vector.shape_cast %64 : vector<1x1x8x128xbf16> to vector<8x128xbf16>
    %66 = arith.extf %65 : vector<8x128xbf16> to vector<8x128xf32>
    %67 = arith.addf %63, %66 : vector<8x128xf32>
    %cst_19 = arith.constant 2.500000e-01 : f32
    %68 = vector.broadcast %cst_19 : f32 to vector<8x128xf32>
    %69 = arith.mulf %68, %67 : vector<8x128xf32>
    %70 = vector.shape_cast %69 : vector<8x128xf32> to vector<1x8x128xf32>
    %c2_i32 = arith.constant 2 : i32
    %71 = arith.addi %4, %c2_i32 : i32
    %72 = arith.index_cast %71 : i32 to index
    %c8_20 = arith.constant 8 : index
    %c0_21 = arith.constant 0 : index
    %73 = vector.load %arg8[%72, %c8_20, %c0_21] : memref<10x24x128xf32, #tpu.memory_space<vmem>>, vector<1x8x128xf32>
    tpu.vector_store %arg8[%72, %c8_20, %c0_21], %70 {strides = array<i32>} : memref<10x24x128xf32, #tpu.memory_space<vmem>>, vector<1x8x128xf32>,
    %c0_22 = arith.constant 0 : index
    %c6 = arith.constant 6 : index
    %c0_23 = arith.constant 0 : index
    %c0_24 = arith.constant 0 : index
    %c0_25 = arith.constant 0 : index
    %74 = vector.load %arg2[%c0_22, %c6, %c0_23, %c0_24, %c0_25] : memref<1x16x2x8x128xbf16, #tpu.memory_space<vmem>>, vector<1x2x2x8x128xbf16>
    %75 = vector.shape_cast %74 : vector<1x2x2x8x128xbf16> to vector<2x2x8x128xbf16>
    %76 = vector.extract_strided_slice %75 {offsets = [0, 0, 0, 0], sizes = [1, 1, 8, 128], strides = [1, 1, 1, 1]} : vector<2x2x8x128xbf16> to vector<1x1x8x128xbf16>
    %77 = vector.shape_cast %76 : vector<1x1x8x128xbf16> to vector<8x128xbf16>
    %78 = arith.extf %77 : vector<8x128xbf16> to vector<8x128xf32>
    %79 = vector.extract_strided_slice %75 {offsets = [0, 1, 0, 0], sizes = [1, 1, 8, 128], strides = [1, 1, 1, 1]} : vector<2x2x8x128xbf16> to vector<1x1x8x128xbf16>
    %80 = vector.shape_cast %79 : vector<1x1x8x128xbf16> to vector<8x128xbf16>
    %81 = arith.extf %80 : vector<8x128xbf16> to vector<8x128xf32>
    %82 = arith.addf %78, %81 : vector<8x128xf32>
    %83 = vector.extract_strided_slice %75 {offsets = [1, 0, 0, 0], sizes = [1, 1, 8, 128], strides = [1, 1, 1, 1]} : vector<2x2x8x128xbf16> to vector<1x1x8x128xbf16>
    %84 = vector.shape_cast %83 : vector<1x1x8x128xbf16> to vector<8x128xbf16>
    %85 = arith.extf %84 : vector<8x128xbf16> to vector<8x128xf32>
    %86 = arith.addf %82, %85 : vector<8x128xf32>
    %87 = vector.extract_strided_slice %75 {offsets = [1, 1, 0, 0], sizes = [1, 1, 8, 128], strides = [1, 1, 1, 1]} : vector<2x2x8x128xbf16> to vector<1x1x8x128xbf16>
    %88 = vector.shape_cast %87 : vector<1x1x8x128xbf16> to vector<8x128xbf16>
    %89 = arith.extf %88 : vector<8x128xbf16> to vector<8x128xf32>
    %90 = arith.addf %86, %89 : vector<8x128xf32>
    %cst_26 = arith.constant 2.500000e-01 : f32
    %91 = vector.broadcast %cst_26 : f32 to vector<8x128xf32>
    %92 = arith.mulf %91, %90 : vector<8x128xf32>
    %93 = vector.shape_cast %92 : vector<8x128xf32> to vector<1x8x128xf32>
    %c3_i32 = arith.constant 3 : i32
    %94 = arith.addi %4, %c3_i32 : i32
    %95 = arith.index_cast %94 : i32 to index
    %c8_27 = arith.constant 8 : index
    %c0_28 = arith.constant 0 : index
    %96 = vector.load %arg8[%95, %c8_27, %c0_28] : memref<10x24x128xf32, #tpu.memory_space<vmem>>, vector<1x8x128xf32>
    tpu.vector_store %arg8[%95, %c8_27, %c0_28], %93 {strides = array<i32>} : memref<10x24x128xf32, #tpu.memory_space<vmem>>, vector<1x8x128xf32>,
    %c0_29 = arith.constant 0 : index
    %c8_30 = arith.constant 8 : index
    %c0_31 = arith.constant 0 : index
    %c0_32 = arith.constant 0 : index
    %c0_33 = arith.constant 0 : index
    %97 = vector.load %arg2[%c0_29, %c8_30, %c0_31, %c0_32, %c0_33] : memref<1x16x2x8x128xbf16, #tpu.memory_space<vmem>>, vector<1x2x2x8x128xbf16>
    %98 = vector.shape_cast %97 : vector<1x2x2x8x128xbf16> to vector<2x2x8x128xbf16>
    %99 = vector.extract_strided_slice %98 {offsets = [0, 0, 0, 0], sizes = [1, 1, 8, 128], strides = [1, 1, 1, 1]} : vector<2x2x8x128xbf16> to vector<1x1x8x128xbf16>
    %100 = vector.shape_cast %99 : vector<1x1x8x128xbf16> to vector<8x128xbf16>
    %101 = arith.extf %100 : vector<8x128xbf16> to vector<8x128xf32>
    %102 = vector.extract_strided_slice %98 {offsets = [0, 1, 0, 0], sizes = [1, 1, 8, 128], strides = [1, 1, 1, 1]} : vector<2x2x8x128xbf16> to vector<1x1x8x128xbf16>
    %103 = vector.shape_cast %102 : vector<1x1x8x128xbf16> to vector<8x128xbf16>
    %104 = arith.extf %103 : vector<8x128xbf16> to vector<8x128xf32>
    %105 = arith.addf %101, %104 : vector<8x128xf32>
    %106 = vector.extract_strided_slice %98 {offsets = [1, 0, 0, 0], sizes = [1, 1, 8, 128], strides = [1, 1, 1, 1]} : vector<2x2x8x128xbf16> to vector<1x1x8x128xbf16>
    %107 = vector.shape_cast %106 : vector<1x1x8x128xbf16> to vector<8x128xbf16>
    %108 = arith.extf %107 : vector<8x128xbf16> to vector<8x128xf32>
    %109 = arith.addf %105, %108 : vector<8x128xf32>
    %110 = vector.extract_strided_slice %98 {offsets = [1, 1, 0, 0], sizes = [1, 1, 8, 128], strides = [1, 1, 1, 1]} : vector<2x2x8x128xbf16> to vector<1x1x8x128xbf16>
    %111 = vector.shape_cast %110 : vector<1x1x8x128xbf16> to vector<8x128xbf16>
    %112 = arith.extf %111 : vector<8x128xbf16> to vector<8x128xf32>
    %113 = arith.addf %109, %112 : vector<8x128xf32>
    %cst_34 = arith.constant 2.500000e-01 : f32
    %114 = vector.broadcast %cst_34 : f32 to vector<8x128xf32>
    %115 = arith.mulf %114, %113 : vector<8x128xf32>
    %116 = vector.shape_cast %115 : vector<8x128xf32> to vector<1x8x128xf32>
    %c4_i32 = arith.constant 4 : i32
    %117 = arith.addi %4, %c4_i32 : i32
    %118 = arith.index_cast %117 : i32 to index
    %c8_35 = arith.constant 8 : index
    %c0_36 = arith.constant 0 : index
    %119 = vector.load %arg8[%118, %c8_35, %c0_36] : memref<10x24x128xf32, #tpu.memory_space<vmem>>, vector<1x8x128xf32>
    tpu.vector_store %arg8[%118, %c8_35, %c0_36], %116 {strides = array<i32>} : memref<10x24x128xf32, #tpu.memory_space<vmem>>, vector<1x8x128xf32>,
    %c0_37 = arith.constant 0 : index
    %c10 = arith.constant 10 : index
    %c0_38 = arith.constant 0 : index
    %c0_39 = arith.constant 0 : index
    %c0_40 = arith.constant 0 : index
    %120 = vector.load %arg2[%c0_37, %c10, %c0_38, %c0_39, %c0_40] : memref<1x16x2x8x128xbf16, #tpu.memory_space<vmem>>, vector<1x2x2x8x128xbf16>
    %121 = vector.shape_cast %120 : vector<1x2x2x8x128xbf16> to vector<2x2x8x128xbf16>
    %122 = vector.extract_strided_slice %121 {offsets = [0, 0, 0, 0], sizes = [1, 1, 8, 128], strides = [1, 1, 1, 1]} : vector<2x2x8x128xbf16> to vector<1x1x8x128xbf16>
    %123 = vector.shape_cast %122 : vector<1x1x8x128xbf16> to vector<8x128xbf16>
    %124 = arith.extf %123 : vector<8x128xbf16> to vector<8x128xf32>
    %125 = vector.extract_strided_slice %121 {offsets = [0, 1, 0, 0], sizes = [1, 1, 8, 128], strides = [1, 1, 1, 1]} : vector<2x2x8x128xbf16> to vector<1x1x8x128xbf16>
    %126 = vector.shape_cast %125 : vector<1x1x8x128xbf16> to vector<8x128xbf16>
    %127 = arith.extf %126 : vector<8x128xbf16> to vector<8x128xf32>
    %128 = arith.addf %124, %127 : vector<8x128xf32>
    %129 = vector.extract_strided_slice %121 {offsets = [1, 0, 0, 0], sizes = [1, 1, 8, 128], strides = [1, 1, 1, 1]} : vector<2x2x8x128xbf16> to vector<1x1x8x128xbf16>
    %130 = vector.shape_cast %129 : vector<1x1x8x128xbf16> to vector<8x128xbf16>
    %131 = arith.extf %130 : vector<8x128xbf16> to vector<8x128xf32>
    %132 = arith.addf %128, %131 : vector<8x128xf32>
    %133 = vector.extract_strided_slice %121 {offsets = [1, 1, 0, 0], sizes = [1, 1, 8, 128], strides = [1, 1, 1, 1]} : vector<2x2x8x128xbf16> to vector<1x1x8x128xbf16>
    %134 = vector.shape_cast %133 : vector<1x1x8x128xbf16> to vector<8x128xbf16>
    %135 = arith.extf %134 : vector<8x128xbf16> to vector<8x128xf32>
    %136 = arith.addf %132, %135 : vector<8x128xf32>
    %cst_41 = arith.constant 2.500000e-01 : f32
    %137 = vector.broadcast %cst_41 : f32 to vector<8x128xf32>
    %138 = arith.mulf %137, %136 : vector<8x128xf32>
    %139 = vector.shape_cast %138 : vector<8x128xf32> to vector<1x8x128xf32>
    %c5_i32 = arith.constant 5 : i32
    %140 = arith.addi %4, %c5_i32 : i32
    %141 = arith.index_cast %140 : i32 to index
    %c8_42 = arith.constant 8 : index
    %c0_43 = arith.constant 0 : index
    %142 = vector.load %arg8[%141, %c8_42, %c0_43] : memref<10x24x128xf32, #tpu.memory_space<vmem>>, vector<1x8x128xf32>
    tpu.vector_store %arg8[%141, %c8_42, %c0_43], %139 {strides = array<i32>} : memref<10x24x128xf32, #tpu.memory_space<vmem>>, vector<1x8x128xf32>,
    %c0_44 = arith.constant 0 : index
    %c12 = arith.constant 12 : index
    %c0_45 = arith.constant 0 : index
    %c0_46 = arith.constant 0 : index
    %c0_47 = arith.constant 0 : index
    %143 = vector.load %arg2[%c0_44, %c12, %c0_45, %c0_46, %c0_47] : memref<1x16x2x8x128xbf16, #tpu.memory_space<vmem>>, vector<1x2x2x8x128xbf16>
    %144 = vector.shape_cast %143 : vector<1x2x2x8x128xbf16> to vector<2x2x8x128xbf16>
    %145 = vector.extract_strided_slice %144 {offsets = [0, 0, 0, 0], sizes = [1, 1, 8, 128], strides = [1, 1, 1, 1]} : vector<2x2x8x128xbf16> to vector<1x1x8x128xbf16>
    %146 = vector.shape_cast %145 : vector<1x1x8x128xbf16> to vector<8x128xbf16>
    %147 = arith.extf %146 : vector<8x128xbf16> to vector<8x128xf32>
    %148 = vector.extract_strided_slice %144 {offsets = [0, 1, 0, 0], sizes = [1, 1, 8, 128], strides = [1, 1, 1, 1]} : vector<2x2x8x128xbf16> to vector<1x1x8x128xbf16>
    %149 = vector.shape_cast %148 : vector<1x1x8x128xbf16> to vector<8x128xbf16>
    %150 = arith.extf %149 : vector<8x128xbf16> to vector<8x128xf32>
    %151 = arith.addf %147, %150 : vector<8x128xf32>
    %152 = vector.extract_strided_slice %144 {offsets = [1, 0, 0, 0], sizes = [1, 1, 8, 128], strides = [1, 1, 1, 1]} : vector<2x2x8x128xbf16> to vector<1x1x8x128xbf16>
    %153 = vector.shape_cast %152 : vector<1x1x8x128xbf16> to vector<8x128xbf16>
    %154 = arith.extf %153 : vector<8x128xbf16> to vector<8x128xf32>
    %155 = arith.addf %151, %154 : vector<8x128xf32>
    %156 = vector.extract_strided_slice %144 {offsets = [1, 1, 0, 0], sizes = [1, 1, 8, 128], strides = [1, 1, 1, 1]} : vector<2x2x8x128xbf16> to vector<1x1x8x128xbf16>
    %157 = vector.shape_cast %156 : vector<1x1x8x128xbf16> to vector<8x128xbf16>
    %158 = arith.extf %157 : vector<8x128xbf16> to vector<8x128xf32>
    %159 = arith.addf %155, %158 : vector<8x128xf32>
    %cst_48 = arith.constant 2.500000e-01 : f32
    %160 = vector.broadcast %cst_48 : f32 to vector<8x128xf32>
    %161 = arith.mulf %160, %159 : vector<8x128xf32>
    %162 = vector.shape_cast %161 : vector<8x128xf32> to vector<1x8x128xf32>
    %c6_i32 = arith.constant 6 : i32
    %163 = arith.addi %4, %c6_i32 : i32
    %164 = arith.index_cast %163 : i32 to index
    %c8_49 = arith.constant 8 : index
    %c0_50 = arith.constant 0 : index
    %165 = vector.load %arg8[%164, %c8_49, %c0_50] : memref<10x24x128xf32, #tpu.memory_space<vmem>>, vector<1x8x128xf32>
    tpu.vector_store %arg8[%164, %c8_49, %c0_50], %162 {strides = array<i32>} : memref<10x24x128xf32, #tpu.memory_space<vmem>>, vector<1x8x128xf32>,
    %c0_51 = arith.constant 0 : index
    %c14 = arith.constant 14 : index
    %c0_52 = arith.constant 0 : index
    %c0_53 = arith.constant 0 : index
    %c0_54 = arith.constant 0 : index
    %166 = vector.load %arg2[%c0_51, %c14, %c0_52, %c0_53, %c0_54] : memref<1x16x2x8x128xbf16, #tpu.memory_space<vmem>>, vector<1x2x2x8x128xbf16>
    %167 = vector.shape_cast %166 : vector<1x2x2x8x128xbf16> to vector<2x2x8x128xbf16>
    %168 = vector.extract_strided_slice %167 {offsets = [0, 0, 0, 0], sizes = [1, 1, 8, 128], strides = [1, 1, 1, 1]} : vector<2x2x8x128xbf16> to vector<1x1x8x128xbf16>
    %169 = vector.shape_cast %168 : vector<1x1x8x128xbf16> to vector<8x128xbf16>
    %170 = arith.extf %169 : vector<8x128xbf16> to vector<8x128xf32>
    %171 = vector.extract_strided_slice %167 {offsets = [0, 1, 0, 0], sizes = [1, 1, 8, 128], strides = [1, 1, 1, 1]} : vector<2x2x8x128xbf16> to vector<1x1x8x128xbf16>
    %172 = vector.shape_cast %171 : vector<1x1x8x128xbf16> to vector<8x128xbf16>
    %173 = arith.extf %172 : vector<8x128xbf16> to vector<8x128xf32>
    %174 = arith.addf %170, %173 : vector<8x128xf32>
    %175 = vector.extract_strided_slice %167 {offsets = [1, 0, 0, 0], sizes = [1, 1, 8, 128], strides = [1, 1, 1, 1]} : vector<2x2x8x128xbf16> to vector<1x1x8x128xbf16>
    %176 = vector.shape_cast %175 : vector<1x1x8x128xbf16> to vector<8x128xbf16>
    %177 = arith.extf %176 : vector<8x128xbf16> to vector<8x128xf32>
    %178 = arith.addf %174, %177 : vector<8x128xf32>
    %179 = vector.extract_strided_slice %167 {offsets = [1, 1, 0, 0], sizes = [1, 1, 8, 128], strides = [1, 1, 1, 1]} : vector<2x2x8x128xbf16> to vector<1x1x8x128xbf16>
    %180 = vector.shape_cast %179 : vector<1x1x8x128xbf16> to vector<8x128xbf16>
    %181 = arith.extf %180 : vector<8x128xbf16> to vector<8x128xf32>
    %182 = arith.addf %178, %181 : vector<8x128xf32>
    %cst_55 = arith.constant 2.500000e-01 : f32
    %183 = vector.broadcast %cst_55 : f32 to vector<8x128xf32>
    %184 = arith.mulf %183, %182 : vector<8x128xf32>
    %185 = vector.shape_cast %184 : vector<8x128xf32> to vector<1x8x128xf32>
    %c7_i32 = arith.constant 7 : i32
    %186 = arith.addi %4, %c7_i32 : i32
    %187 = arith.index_cast %186 : i32 to index
    %c8_56 = arith.constant 8 : index
    %c0_57 = arith.constant 0 : index
    %188 = vector.load %arg8[%187, %c8_56, %c0_57] : memref<10x24x128xf32, #tpu.memory_space<vmem>>, vector<1x8x128xf32>
    tpu.vector_store %arg8[%187, %c8_56, %c0_57], %185 {strides = array<i32>} : memref<10x24x128xf32, #tpu.memory_space<vmem>>, vector<1x8x128xf32>,
    %c0_i32_58 = arith.constant 0 : i32
    %189 = arith.cmpi eq, %arg1, %c0_i32_58 : i32
    %190 = arith.extui %189 : i1 to i32
    %c0_i32_59 = arith.constant 0 : i32
    %191 = arith.cmpi ne, %190, %c0_i32_59 : i32
    scf.if %191 {
      %c0_60 = arith.constant 0 : index
      %c0_61 = arith.constant 0 : index
      %192 = vector.load %arg3[%c0_60, %c0_61] : memref<27x128xf32, #tpu.memory_space<vmem>>, vector<27x128xf32>
      %c0_62 = arith.constant 0 : index
      %c0_63 = arith.constant 0 : index
      %193 = vector.load %arg4[%c0_62, %c0_63] : memref<3x128xf32, #tpu.memory_space<vmem>>, vector<3x128xf32>
      %c0_64 = arith.constant 0 : index
      %c0_65 = arith.constant 0 : index
      %194 = vector.load %arg5[%c0_64, %c0_65] : memref<27x128xf32, #tpu.memory_space<vmem>>, vector<27x128xf32>
      %c0_66 = arith.constant 0 : index
      %c0_67 = arith.constant 0 : index
      %195 = vector.load %arg6[%c0_66, %c0_67] : memref<3x128xf32, #tpu.memory_space<vmem>>, vector<3x128xf32>
      %196 = vector.extract_strided_slice %192 {offsets = [0, 0], sizes = [1, 128], strides = [1, 1]} : vector<27x128xf32> to vector<1x128xf32>
      %197 = vector.shape_cast %196 : vector<1x128xf32> to vector<128xf32>
      %198 = vector.shape_cast %197 : vector<128xf32> to vector<1x1x128xf32>
      %199 = vector.extract_strided_slice %192 {offsets = [1, 0], sizes = [1, 128], strides = [1, 1]} : vector<27x128xf32> to vector<1x128xf32>
      %200 = vector.shape_cast %199 : vector<1x128xf32> to vector<128xf32>
      %201 = vector.shape_cast %200 : vector<128xf32> to vector<1x1x128xf32>
      %202 = vector.extract_strided_slice %192 {offsets = [2, 0], sizes = [1, 128], strides = [1, 1]} : vector<27x128xf32> to vector<1x128xf32>
      %203 = vector.shape_cast %202 : vector<1x128xf32> to vector<128xf32>
      %204 = vector.shape_cast %203 : vector<128xf32> to vector<1x1x128xf32>
      %205 = vector.extract_strided_slice %192 {offsets = [3, 0], sizes = [1, 128], strides = [1, 1]} : vector<27x128xf32> to vector<1x128xf32>
      %206 = vector.shape_cast %205 : vector<1x128xf32> to vector<128xf32>
      %207 = vector.shape_cast %206 : vector<128xf32> to vector<1x1x128xf32>
      %208 = vector.extract_strided_slice %192 {offsets = [4, 0], sizes = [1, 128], strides = [1, 1]} : vector<27x128xf32> to vector<1x128xf32>
      %209 = vector.shape_cast %208 : vector<1x128xf32> to vector<128xf32>
      %210 = vector.shape_cast %209 : vector<128xf32> to vector<1x1x128xf32>
      %211 = vector.extract_strided_slice %192 {offsets = [5, 0], sizes = [1, 128], strides = [1, 1]} : vector<27x128xf32> to vector<1x128xf32>
      %212 = vector.shape_cast %211 : vector<1x128xf32> to vector<128xf32>
      %213 = vector.shape_cast %212 : vector<128xf32> to vector<1x1x128xf32>
      %214 = vector.extract_strided_slice %192 {offsets = [6, 0], sizes = [1, 128], strides = [1, 1]} : vector<27x128xf32> to vector<1x128xf32>
      %215 = vector.shape_cast %214 : vector<1x128xf32> to vector<128xf32>
      %216 = vector.shape_cast %215 : vector<128xf32> to vector<1x1x128xf32>
      %217 = vector.extract_strided_slice %192 {offsets = [7, 0], sizes = [1, 128], strides = [1, 1]} : vector<27x128xf32> to vector<1x128xf32>
      %218 = vector.shape_cast %217 : vector<1x128xf32> to vector<128xf32>
      %219 = vector.shape_cast %218 : vector<128xf32> to vector<1x1x128xf32>
      %220 = vector.extract_strided_slice %192 {offsets = [8, 0], sizes = [1, 128], strides = [1, 1]} : vector<27x128xf32> to vector<1x128xf32>
      %221 = vector.shape_cast %220 : vector<1x128xf32> to vector<128xf32>
      %222 = vector.shape_cast %221 : vector<128xf32> to vector<1x1x128xf32>
      %223 = vector.extract_strided_slice %193 {offsets = [0, 0], sizes = [1, 128], strides = [1, 1]} : vector<3x128xf32> to vector<1x128xf32>
      %224 = vector.shape_cast %223 : vector<1x128xf32> to vector<128xf32>
      %225 = vector.shape_cast %224 : vector<128xf32> to vector<1x1x128xf32>
      %c0_i32_68 = arith.constant 0 : i32
      %c8_i32_69 = arith.constant 8 : i32
      %226 = arith.muli %c0_i32_68, %c8_i32_69 : i32
      %227 = vector.shape_cast %225 : vector<1x1x128xf32> to vector<1x1x128xf32>
      %228 = vector.broadcast %227 : vector<1x1x128xf32> to vector<8x8x128xf32>
      %c0_i32_70 = arith.constant 0 : i32
      %229 = arith.addi %226, %c0_i32_70 : i32
      %230 = arith.index_cast %229 : i32 to index
      %c7 = arith.constant 7 : index
      %c0_71 = arith.constant 0 : index
      %231 = vector.load %arg8[%230, %c7, %c0_71] : memref<10x24x128xf32, #tpu.memory_space<vmem>>, vector<8x10x128xf32>
      %232 = vector.extract_strided_slice %231 {offsets = [0, 0, 0], sizes = [8, 8, 128], strides = [1, 1, 1]} : vector<8x10x128xf32> to vector<8x8x128xf32>
      %233 = vector.broadcast %198 : vector<1x1x128xf32> to vector<8x8x128xf32>
      %234 = arith.mulf %233, %232 : vector<8x8x128xf32>
      %235 = arith.addf %228, %234 : vector<8x8x128xf32>
      %236 = vector.extract_strided_slice %231 {offsets = [0, 1, 0], sizes = [8, 8, 128], strides = [1, 1, 1]} : vector<8x10x128xf32> to vector<8x8x128xf32>
      %237 = vector.broadcast %201 : vector<1x1x128xf32> to vector<8x8x128xf32>
      %238 = arith.mulf %237, %236 : vector<8x8x128xf32>
      %239 = arith.addf %235, %238 : vector<8x8x128xf32>
      %240 = vector.extract_strided_slice %231 {offsets = [0, 2, 0], sizes = [8, 8, 128], strides = [1, 1, 1]} : vector<8x10x128xf32> to vector<8x8x128xf32>
      %241 = vector.broadcast %204 : vector<1x1x128xf32> to vector<8x8x128xf32>
      %242 = arith.mulf %241, %240 : vector<8x8x128xf32>
      %243 = arith.addf %239, %242 : vector<8x8x128xf32>
      %c1_i32_72 = arith.constant 1 : i32
      %244 = arith.addi %226, %c1_i32_72 : i32
      %245 = arith.index_cast %244 : i32 to index
      %c7_73 = arith.constant 7 : index
      %c0_74 = arith.constant 0 : index
      %246 = vector.load %arg8[%245, %c7_73, %c0_74] : memref<10x24x128xf32, #tpu.memory_space<vmem>>, vector<8x10x128xf32>
      %247 = vector.extract_strided_slice %246 {offsets = [0, 0, 0], sizes = [8, 8, 128], strides = [1, 1, 1]} : vector<8x10x128xf32> to vector<8x8x128xf32>
      %248 = vector.broadcast %207 : vector<1x1x128xf32> to vector<8x8x128xf32>
      %249 = arith.mulf %248, %247 : vector<8x8x128xf32>
      %250 = arith.addf %243, %249 : vector<8x8x128xf32>
      %251 = vector.extract_strided_slice %246 {offsets = [0, 1, 0], sizes = [8, 8, 128], strides = [1, 1, 1]} : vector<8x10x128xf32> to vector<8x8x128xf32>
      %252 = vector.broadcast %210 : vector<1x1x128xf32> to vector<8x8x128xf32>
      %253 = arith.mulf %252, %251 : vector<8x8x128xf32>
      %254 = arith.addf %250, %253 : vector<8x8x128xf32>
      %255 = vector.extract_strided_slice %246 {offsets = [0, 2, 0], sizes = [8, 8, 128], strides = [1, 1, 1]} : vector<8x10x128xf32> to vector<8x8x128xf32>
      %256 = vector.broadcast %213 : vector<1x1x128xf32> to vector<8x8x128xf32>
      %257 = arith.mulf %256, %255 : vector<8x8x128xf32>
      %258 = arith.addf %254, %257 : vector<8x8x128xf32>
      %c2_i32_75 = arith.constant 2 : i32
      %259 = arith.addi %226, %c2_i32_75 : i32
      %260 = arith.index_cast %259 : i32 to index
      %c7_76 = arith.constant 7 : index
      %c0_77 = arith.constant 0 : index
      %261 = vector.load %arg8[%260, %c7_76, %c0_77] : memref<10x24x128xf32, #tpu.memory_space<vmem>>, vector<8x10x128xf32>
      %262 = vector.extract_strided_slice %261 {offsets = [0, 0, 0], sizes = [8, 8, 128], strides = [1, 1, 1]} : vector<8x10x128xf32> to vector<8x8x128xf32>
      %263 = vector.broadcast %216 : vector<1x1x128xf32> to vector<8x8x128xf32>
      %264 = arith.mulf %263, %262 : vector<8x8x128xf32>
      %265 = arith.addf %258, %264 : vector<8x8x128xf32>
      %266 = vector.extract_strided_slice %261 {offsets = [0, 1, 0], sizes = [8, 8, 128], strides = [1, 1, 1]} : vector<8x10x128xf32> to vector<8x8x128xf32>
      %267 = vector.broadcast %219 : vector<1x1x128xf32> to vector<8x8x128xf32>
      %268 = arith.mulf %267, %266 : vector<8x8x128xf32>
      %269 = arith.addf %265, %268 : vector<8x8x128xf32>
      %270 = vector.extract_strided_slice %261 {offsets = [0, 2, 0], sizes = [8, 8, 128], strides = [1, 1, 1]} : vector<8x10x128xf32> to vector<8x8x128xf32>
      %271 = vector.broadcast %222 : vector<1x1x128xf32> to vector<8x8x128xf32>
      %272 = arith.mulf %271, %270 : vector<8x8x128xf32>
      %273 = arith.addf %269, %272 : vector<8x8x128xf32>
      %c1_i32_78 = arith.constant 1 : i32
      %274 = arith.addi %c1_i32_78, %226 : i32
      %275 = arith.index_cast %274 : i32 to index
      %c8_79 = arith.constant 8 : index
      %c0_80 = arith.constant 0 : index
      %276 = vector.load %arg9[%275, %c8_79, %c0_80] : memref<10x24x128xf32, #tpu.memory_space<vmem>>, vector<8x8x128xf32>
      tpu.vector_store %arg9[%275, %c8_79, %c0_80], %273 {strides = array<i32>} : memref<10x24x128xf32, #tpu.memory_space<vmem>>, vector<8x8x128xf32>,
      %c1_i32_81 = arith.constant 1 : i32
      %277 = vector.extract_strided_slice %192 {offsets = [9, 0], sizes = [1, 128], strides = [1, 1]} : vector<27x128xf32> to vector<1x128xf32>
      %278 = vector.shape_cast %277 : vector<1x128xf32> to vector<128xf32>
      %279 = vector.shape_cast %278 : vector<128xf32> to vector<1x1x128xf32>
      %280 = vector.extract_strided_slice %192 {offsets = [10, 0], sizes = [1, 128], strides = [1, 1]} : vector<27x128xf32> to vector<1x128xf32>
      %281 = vector.shape_cast %280 : vector<1x128xf32> to vector<128xf32>
      %282 = vector.shape_cast %281 : vector<128xf32> to vector<1x1x128xf32>
      %283 = vector.extract_strided_slice %192 {offsets = [11, 0], sizes = [1, 128], strides = [1, 1]} : vector<27x128xf32> to vector<1x128xf32>
      %284 = vector.shape_cast %283 : vector<1x128xf32> to vector<128xf32>
      %285 = vector.shape_cast %284 : vector<128xf32> to vector<1x1x128xf32>
      %286 = vector.extract_strided_slice %192 {offsets = [12, 0], sizes = [1, 128], strides = [1, 1]} : vector<27x128xf32> to vector<1x128xf32>
      %287 = vector.shape_cast %286 : vector<1x128xf32> to vector<128xf32>
      %288 = vector.shape_cast %287 : vector<128xf32> to vector<1x1x128xf32>
      %289 = vector.extract_strided_slice %192 {offsets = [13, 0], sizes = [1, 128], strides = [1, 1]} : vector<27x128xf32> to vector<1x128xf32>
      %290 = vector.shape_cast %289 : vector<1x128xf32> to vector<128xf32>
      %291 = vector.shape_cast %290 : vector<128xf32> to vector<1x1x128xf32>
      %292 = vector.extract_strided_slice %192 {offsets = [14, 0], sizes = [1, 128], strides = [1, 1]} : vector<27x128xf32> to vector<1x128xf32>
      %293 = vector.shape_cast %292 : vector<1x128xf32> to vector<128xf32>
      %294 = vector.shape_cast %293 : vector<128xf32> to vector<1x1x128xf32>
      %295 = vector.extract_strided_slice %192 {offsets = [15, 0], sizes = [1, 128], strides = [1, 1]} : vector<27x128xf32> to vector<1x128xf32>
      %296 = vector.shape_cast %295 : vector<1x128xf32> to vector<128xf32>
      %297 = vector.shape_cast %296 : vector<128xf32> to vector<1x1x128xf32>
      %298 = vector.extract_strided_slice %192 {offsets = [16, 0], sizes = [1, 128], strides = [1, 1]} : vector<27x128xf32> to vector<1x128xf32>
      %299 = vector.shape_cast %298 : vector<1x128xf32> to vector<128xf32>
      %300 = vector.shape_cast %299 : vector<128xf32> to vector<1x1x128xf32>
      %301 = vector.extract_strided_slice %192 {offsets = [17, 0], sizes = [1, 128], strides = [1, 1]} : vector<27x128xf32> to vector<1x128xf32>
      %302 = vector.shape_cast %301 : vector<1x128xf32> to vector<128xf32>
      %303 = vector.shape_cast %302 : vector<128xf32> to vector<1x1x128xf32>
      %304 = vector.extract_strided_slice %193 {offsets = [1, 0], sizes = [1, 128], strides = [1, 1]} : vector<3x128xf32> to vector<1x128xf32>
      %305 = vector.shape_cast %304 : vector<1x128xf32> to vector<128xf32>
      %306 = vector.shape_cast %305 : vector<128xf32> to vector<1x1x128xf32>
      %c0_i32_82 = arith.constant 0 : i32
      %c8_i32_83 = arith.constant 8 : i32
      %307 = arith.muli %c0_i32_82, %c8_i32_83 : i32
      %308 = vector.shape_cast %306 : vector<1x1x128xf32> to vector<1x1x128xf32>
      %309 = vector.broadcast %308 : vector<1x1x128xf32> to vector<8x8x128xf32>
      %c0_i32_84 = arith.constant 0 : i32
      %310 = arith.addi %307, %c0_i32_84 : i32
      %311 = arith.index_cast %310 : i32 to index
      %c7_85 = arith.constant 7 : index
      %c0_86 = arith.constant 0 : index
      %312 = vector.load %arg9[%311, %c7_85, %c0_86] : memref<10x24x128xf32, #tpu.memory_space<vmem>>, vector<8x10x128xf32>
      %313 = vector.extract_strided_slice %312 {offsets = [0, 0, 0], sizes = [8, 8, 128], strides = [1, 1, 1]} : vector<8x10x128xf32> to vector<8x8x128xf32>
      %314 = vector.broadcast %279 : vector<1x1x128xf32> to vector<8x8x128xf32>
      %315 = arith.mulf %314, %313 : vector<8x8x128xf32>
      %316 = arith.addf %309, %315 : vector<8x8x128xf32>
      %317 = vector.extract_strided_slice %312 {offsets = [0, 1, 0], sizes = [8, 8, 128], strides = [1, 1, 1]} : vector<8x10x128xf32> to vector<8x8x128xf32>
      %318 = vector.broadcast %282 : vector<1x1x128xf32> to vector<8x8x128xf32>
      %319 = arith.mulf %318, %317 : vector<8x8x128xf32>
      %320 = arith.addf %316, %319 : vector<8x8x128xf32>
      %321 = vector.extract_strided_slice %312 {offsets = [0, 2, 0], sizes = [8, 8, 128], strides = [1, 1, 1]} : vector<8x10x128xf32> to vector<8x8x128xf32>
      %322 = vector.broadcast %285 : vector<1x1x128xf32> to vector<8x8x128xf32>
      %323 = arith.mulf %322, %321 : vector<8x8x128xf32>
      %324 = arith.addf %320, %323 : vector<8x8x128xf32>
      %c1_i32_87 = arith.constant 1 : i32
      %325 = arith.addi %307, %c1_i32_87 : i32
      %326 = arith.index_cast %325 : i32 to index
      %c7_88 = arith.constant 7 : index
      %c0_89 = arith.constant 0 : index
      %327 = vector.load %arg9[%326, %c7_88, %c0_89] : memref<10x24x128xf32, #tpu.memory_space<vmem>>, vector<8x10x128xf32>
      %328 = vector.extract_strided_slice %327 {offsets = [0, 0, 0], sizes = [8, 8, 128], strides = [1, 1, 1]} : vector<8x10x128xf32> to vector<8x8x128xf32>
      %329 = vector.broadcast %288 : vector<1x1x128xf32> to vector<8x8x128xf32>
      %330 = arith.mulf %329, %328 : vector<8x8x128xf32>
      %331 = arith.addf %324, %330 : vector<8x8x128xf32>
      %332 = vector.extract_strided_slice %327 {offsets = [0, 1, 0], sizes = [8, 8, 128], strides = [1, 1, 1]} : vector<8x10x128xf32> to vector<8x8x128xf32>
      %333 = vector.broadcast %291 : vector<1x1x128xf32> to vector<8x8x128xf32>
      %334 = arith.mulf %333, %332 : vector<8x8x128xf32>
      %335 = arith.addf %331, %334 : vector<8x8x128xf32>
      %336 = vector.extract_strided_slice %327 {offsets = [0, 2, 0], sizes = [8, 8, 128], strides = [1, 1, 1]} : vector<8x10x128xf32> to vector<8x8x128xf32>
      %337 = vector.broadcast %294 : vector<1x1x128xf32> to vector<8x8x128xf32>
      %338 = arith.mulf %337, %336 : vector<8x8x128xf32>
      %339 = arith.addf %335, %338 : vector<8x8x128xf32>
      %c2_i32_90 = arith.constant 2 : i32
      %340 = arith.addi %307, %c2_i32_90 : i32
      %341 = arith.index_cast %340 : i32 to index
      %c7_91 = arith.constant 7 : index
      %c0_92 = arith.constant 0 : index
      %342 = vector.load %arg9[%341, %c7_91, %c0_92] : memref<10x24x128xf32, #tpu.memory_space<vmem>>, vector<8x10x128xf32>
      %343 = vector.extract_strided_slice %342 {offsets = [0, 0, 0], sizes = [8, 8, 128], strides = [1, 1, 1]} : vector<8x10x128xf32> to vector<8x8x128xf32>
      %344 = vector.broadcast %297 : vector<1x1x128xf32> to vector<8x8x128xf32>
      %345 = arith.mulf %344, %343 : vector<8x8x128xf32>
      %346 = arith.addf %339, %345 : vector<8x8x128xf32>
      %347 = vector.extract_strided_slice %342 {offsets = [0, 1, 0], sizes = [8, 8, 128], strides = [1, 1, 1]} : vector<8x10x128xf32> to vector<8x8x128xf32>
      %348 = vector.broadcast %300 : vector<1x1x128xf32> to vector<8x8x128xf32>
      %349 = arith.mulf %348, %347 : vector<8x8x128xf32>
      %350 = arith.addf %346, %349 : vector<8x8x128xf32>
      %351 = vector.extract_strided_slice %342 {offsets = [0, 2, 0], sizes = [8, 8, 128], strides = [1, 1, 1]} : vector<8x10x128xf32> to vector<8x8x128xf32>
      %352 = vector.broadcast %303 : vector<1x1x128xf32> to vector<8x8x128xf32>
      %353 = arith.mulf %352, %351 : vector<8x8x128xf32>
      %354 = arith.addf %350, %353 : vector<8x8x128xf32>
      %c1_i32_93 = arith.constant 1 : i32
      %355 = arith.addi %c1_i32_93, %307 : i32
      %356 = arith.index_cast %355 : i32 to index
      %c8_94 = arith.constant 8 : index
      %c0_95 = arith.constant 0 : index
      %357 = vector.load %arg8[%356, %c8_94, %c0_95] : memref<10x24x128xf32, #tpu.memory_space<vmem>>, vector<8x8x128xf32>
      tpu.vector_store %arg8[%356, %c8_94, %c0_95], %354 {strides = array<i32>} : memref<10x24x128xf32, #tpu.memory_space<vmem>>, vector<8x8x128xf32>,
      %c1_i32_96 = arith.constant 1 : i32
      %358 = vector.extract_strided_slice %192 {offsets = [18, 0], sizes = [1, 128], strides = [1, 1]} : vector<27x128xf32> to vector<1x128xf32>
      %359 = vector.shape_cast %358 : vector<1x128xf32> to vector<128xf32>
      %360 = vector.shape_cast %359 : vector<128xf32> to vector<1x1x128xf32>
      %361 = vector.extract_strided_slice %192 {offsets = [19, 0], sizes = [1, 128], strides = [1, 1]} : vector<27x128xf32> to vector<1x128xf32>
      %362 = vector.shape_cast %361 : vector<1x128xf32> to vector<128xf32>
      %363 = vector.shape_cast %362 : vector<128xf32> to vector<1x1x128xf32>
      %364 = vector.extract_strided_slice %192 {offsets = [20, 0], sizes = [1, 128], strides = [1, 1]} : vector<27x128xf32> to vector<1x128xf32>
      %365 = vector.shape_cast %364 : vector<1x128xf32> to vector<128xf32>
      %366 = vector.shape_cast %365 : vector<128xf32> to vector<1x1x128xf32>
      %367 = vector.extract_strided_slice %192 {offsets = [21, 0], sizes = [1, 128], strides = [1, 1]} : vector<27x128xf32> to vector<1x128xf32>
      %368 = vector.shape_cast %367 : vector<1x128xf32> to vector<128xf32>
      %369 = vector.shape_cast %368 : vector<128xf32> to vector<1x1x128xf32>
      %370 = vector.extract_strided_slice %192 {offsets = [22, 0], sizes = [1, 128], strides = [1, 1]} : vector<27x128xf32> to vector<1x128xf32>
      %371 = vector.shape_cast %370 : vector<1x128xf32> to vector<128xf32>
      %372 = vector.shape_cast %371 : vector<128xf32> to vector<1x1x128xf32>
      %373 = vector.extract_strided_slice %192 {offsets = [23, 0], sizes = [1, 128], strides = [1, 1]} : vector<27x128xf32> to vector<1x128xf32>
      %374 = vector.shape_cast %373 : vector<1x128xf32> to vector<128xf32>
      %375 = vector.shape_cast %374 : vector<128xf32> to vector<1x1x128xf32>
      %376 = vector.extract_strided_slice %192 {offsets = [24, 0], sizes = [1, 128], strides = [1, 1]} : vector<27x128xf32> to vector<1x128xf32>
      %377 = vector.shape_cast %376 : vector<1x128xf32> to vector<128xf32>
      %378 = vector.shape_cast %377 : vector<128xf32> to vector<1x1x128xf32>
      %379 = vector.extract_strided_slice %192 {offsets = [25, 0], sizes = [1, 128], strides = [1, 1]} : vector<27x128xf32> to vector<1x128xf32>
      %380 = vector.shape_cast %379 : vector<1x128xf32> to vector<128xf32>
      %381 = vector.shape_cast %380 : vector<128xf32> to vector<1x1x128xf32>
      %382 = vector.extract_strided_slice %192 {offsets = [26, 0], sizes = [1, 128], strides = [1, 1]} : vector<27x128xf32> to vector<1x128xf32>
      %383 = vector.shape_cast %382 : vector<1x128xf32> to vector<128xf32>
      %384 = vector.shape_cast %383 : vector<128xf32> to vector<1x1x128xf32>
      %385 = vector.extract_strided_slice %193 {offsets = [2, 0], sizes = [1, 128], strides = [1, 1]} : vector<3x128xf32> to vector<1x128xf32>
      %386 = vector.shape_cast %385 : vector<1x128xf32> to vector<128xf32>
      %387 = vector.shape_cast %386 : vector<128xf32> to vector<1x1x128xf32>
      %c0_i32_97 = arith.constant 0 : i32
      %c8_i32_98 = arith.constant 8 : i32
      %388 = arith.muli %c0_i32_97, %c8_i32_98 : i32
      %389 = vector.shape_cast %387 : vector<1x1x128xf32> to vector<1x1x128xf32>
      %390 = vector.broadcast %389 : vector<1x1x128xf32> to vector<8x8x128xf32>
      %c0_i32_99 = arith.constant 0 : i32
      %391 = arith.addi %388, %c0_i32_99 : i32
      %392 = arith.index_cast %391 : i32 to index
      %c7_100 = arith.constant 7 : index
      %c0_101 = arith.constant 0 : index
      %393 = vector.load %arg8[%392, %c7_100, %c0_101] : memref<10x24x128xf32, #tpu.memory_space<vmem>>, vector<8x10x128xf32>
      %394 = vector.extract_strided_slice %393 {offsets = [0, 0, 0], sizes = [8, 8, 128], strides = [1, 1, 1]} : vector<8x10x128xf32> to vector<8x8x128xf32>
      %395 = vector.broadcast %360 : vector<1x1x128xf32> to vector<8x8x128xf32>
      %396 = arith.mulf %395, %394 : vector<8x8x128xf32>
      %397 = arith.addf %390, %396 : vector<8x8x128xf32>
      %398 = vector.extract_strided_slice %393 {offsets = [0, 1, 0], sizes = [8, 8, 128], strides = [1, 1, 1]} : vector<8x10x128xf32> to vector<8x8x128xf32>
      %399 = vector.broadcast %363 : vector<1x1x128xf32> to vector<8x8x128xf32>
      %400 = arith.mulf %399, %398 : vector<8x8x128xf32>
      %401 = arith.addf %397, %400 : vector<8x8x128xf32>
      %402 = vector.extract_strided_slice %393 {offsets = [0, 2, 0], sizes = [8, 8, 128], strides = [1, 1, 1]} : vector<8x10x128xf32> to vector<8x8x128xf32>
      %403 = vector.broadcast %366 : vector<1x1x128xf32> to vector<8x8x128xf32>
      %404 = arith.mulf %403, %402 : vector<8x8x128xf32>
      %405 = arith.addf %401, %404 : vector<8x8x128xf32>
      %c1_i32_102 = arith.constant 1 : i32
      %406 = arith.addi %388, %c1_i32_102 : i32
      %407 = arith.index_cast %406 : i32 to index
      %c7_103 = arith.constant 7 : index
      %c0_104 = arith.constant 0 : index
      %408 = vector.load %arg8[%407, %c7_103, %c0_104] : memref<10x24x128xf32, #tpu.memory_space<vmem>>, vector<8x10x128xf32>
      %409 = vector.extract_strided_slice %408 {offsets = [0, 0, 0], sizes = [8, 8, 128], strides = [1, 1, 1]} : vector<8x10x128xf32> to vector<8x8x128xf32>
      %410 = vector.broadcast %369 : vector<1x1x128xf32> to vector<8x8x128xf32>
      %411 = arith.mulf %410, %409 : vector<8x8x128xf32>
      %412 = arith.addf %405, %411 : vector<8x8x128xf32>
      %413 = vector.extract_strided_slice %408 {offsets = [0, 1, 0], sizes = [8, 8, 128], strides = [1, 1, 1]} : vector<8x10x128xf32> to vector<8x8x128xf32>
      %414 = vector.broadcast %372 : vector<1x1x128xf32> to vector<8x8x128xf32>
      %415 = arith.mulf %414, %413 : vector<8x8x128xf32>
      %416 = arith.addf %412, %415 : vector<8x8x128xf32>
      %417 = vector.extract_strided_slice %408 {offsets = [0, 2, 0], sizes = [8, 8, 128], strides = [1, 1, 1]} : vector<8x10x128xf32> to vector<8x8x128xf32>
      %418 = vector.broadcast %375 : vector<1x1x128xf32> to vector<8x8x128xf32>
      %419 = arith.mulf %418, %417 : vector<8x8x128xf32>
      %420 = arith.addf %416, %419 : vector<8x8x128xf32>
      %c2_i32_105 = arith.constant 2 : i32
      %421 = arith.addi %388, %c2_i32_105 : i32
      %422 = arith.index_cast %421 : i32 to index
      %c7_106 = arith.constant 7 : index
      %c0_107 = arith.constant 0 : index
      %423 = vector.load %arg8[%422, %c7_106, %c0_107] : memref<10x24x128xf32, #tpu.memory_space<vmem>>, vector<8x10x128xf32>
      %424 = vector.extract_strided_slice %423 {offsets = [0, 0, 0], sizes = [8, 8, 128], strides = [1, 1, 1]} : vector<8x10x128xf32> to vector<8x8x128xf32>
      %425 = vector.broadcast %378 : vector<1x1x128xf32> to vector<8x8x128xf32>
      %426 = arith.mulf %425, %424 : vector<8x8x128xf32>
      %427 = arith.addf %420, %426 : vector<8x8x128xf32>
      %428 = vector.extract_strided_slice %423 {offsets = [0, 1, 0], sizes = [8, 8, 128], strides = [1, 1, 1]} : vector<8x10x128xf32> to vector<8x8x128xf32>
      %429 = vector.broadcast %381 : vector<1x1x128xf32> to vector<8x8x128xf32>
      %430 = arith.mulf %429, %428 : vector<8x8x128xf32>
      %431 = arith.addf %427, %430 : vector<8x8x128xf32>
      %432 = vector.extract_strided_slice %423 {offsets = [0, 2, 0], sizes = [8, 8, 128], strides = [1, 1, 1]} : vector<8x10x128xf32> to vector<8x8x128xf32>
      %433 = vector.broadcast %384 : vector<1x1x128xf32> to vector<8x8x128xf32>
      %434 = arith.mulf %433, %432 : vector<8x8x128xf32>
      %435 = arith.addf %431, %434 : vector<8x8x128xf32>
      %c1_i32_108 = arith.constant 1 : i32
      %436 = arith.addi %c1_i32_108, %388 : i32
      %437 = arith.index_cast %436 : i32 to index
      %c8_109 = arith.constant 8 : index
      %c0_110 = arith.constant 0 : index
      %438 = vector.load %arg9[%437, %c8_109, %c0_110] : memref<10x24x128xf32, #tpu.memory_space<vmem>>, vector<8x8x128xf32>
      tpu.vector_store %arg9[%437, %c8_109, %c0_110], %435 {strides = array<i32>} : memref<10x24x128xf32, #tpu.memory_space<vmem>>, vector<8x8x128xf32>,
      %c1_i32_111 = arith.constant 1 : i32
      %c0_i32_112 = arith.constant 0 : i32
      %c4_i32_113 = arith.constant 4 : i32
      %439 = arith.muli %c0_i32_112, %c4_i32_113 : i32
      %c2_i32_114 = arith.constant 2 : i32
      %440 = arith.muli %c2_i32_114, %439 : i32
      %c1_i32_115 = arith.constant 1 : i32
      %441 = arith.addi %c1_i32_115, %440 : i32
      %442 = arith.index_cast %441 : i32 to index
      %c8_116 = arith.constant 8 : index
      %c0_117 = arith.constant 0 : index
      %443 = vector.load %arg9[%442, %c8_116, %c0_117] : memref<10x24x128xf32, #tpu.memory_space<vmem>>, vector<8x8x128xf32>
      %444 = vector.shape_cast %443 : vector<8x8x128xf32> to vector<4x2x8x128xf32>
      %445 = vector.extract_strided_slice %444 {offsets = [0, 0, 0, 0], sizes = [4, 1, 8, 128], strides = [1, 1, 1, 1]} : vector<4x2x8x128xf32> to vector<4x1x8x128xf32>
      %446 = vector.shape_cast %445 : vector<4x1x8x128xf32> to vector<4x8x128xf32>
      %447 = vector.extract_strided_slice %444 {offsets = [0, 1, 0, 0], sizes = [4, 1, 8, 128], strides = [1, 1, 1, 1]} : vector<4x2x8x128xf32> to vector<4x1x8x128xf32>
      %448 = vector.shape_cast %447 : vector<4x1x8x128xf32> to vector<4x8x128xf32>
      %449 = arith.maximumf %446, %448 : vector<4x8x128xf32>
      %450 = vector.shape_cast %449 : vector<4x8x128xf32> to vector<4x4x2x128xf32>
      %451 = vector.extract_strided_slice %450 {offsets = [0, 0, 0, 0], sizes = [4, 4, 1, 128], strides = [1, 1, 1, 1]} : vector<4x4x2x128xf32> to vector<4x4x1x128xf32>
      %452 = vector.shape_cast %451 : vector<4x4x1x128xf32> to vector<4x4x128xf32>
      %453 = vector.extract_strided_slice %450 {offsets = [0, 0, 1, 0], sizes = [4, 4, 1, 128], strides = [1, 1, 1, 1]} : vector<4x4x2x128xf32> to vector<4x4x1x128xf32>
      %454 = vector.shape_cast %453 : vector<4x4x1x128xf32> to vector<4x4x128xf32>
      %455 = arith.maximumf %452, %454 : vector<4x4x128xf32>
      %c1_i32_118 = arith.constant 1 : i32
      %456 = arith.addi %c1_i32_118, %439 : i32
      %457 = arith.index_cast %456 : i32 to index
      %c8_119 = arith.constant 8 : index
      %c0_120 = arith.constant 0 : index
      %458 = vector.load %arg10[%457, %c8_119, %c0_120] : memref<6x16x128xf32, #tpu.memory_space<vmem>>, vector<4x4x128xf32>
      tpu.vector_store %arg10[%457, %c8_119, %c0_120], %455 {strides = array<i32>} : memref<6x16x128xf32, #tpu.memory_space<vmem>>, vector<4x4x128xf32>,
      %c1_i32_121 = arith.constant 1 : i32
      %459 = vector.extract_strided_slice %194 {offsets = [0, 0], sizes = [1, 128], strides = [1, 1]} : vector<27x128xf32> to vector<1x128xf32>
      %460 = vector.shape_cast %459 : vector<1x128xf32> to vector<128xf32>
      %461 = vector.shape_cast %460 : vector<128xf32> to vector<1x1x128xf32>
      %462 = vector.extract_strided_slice %194 {offsets = [1, 0], sizes = [1, 128], strides = [1, 1]} : vector<27x128xf32> to vector<1x128xf32>
      %463 = vector.shape_cast %462 : vector<1x128xf32> to vector<128xf32>
      %464 = vector.shape_cast %463 : vector<128xf32> to vector<1x1x128xf32>
      %465 = vector.extract_strided_slice %194 {offsets = [2, 0], sizes = [1, 128], strides = [1, 1]} : vector<27x128xf32> to vector<1x128xf32>
      %466 = vector.shape_cast %465 : vector<1x128xf32> to vector<128xf32>
      %467 = vector.shape_cast %466 : vector<128xf32> to vector<1x1x128xf32>
      %468 = vector.extract_strided_slice %194 {offsets = [3, 0], sizes = [1, 128], strides = [1, 1]} : vector<27x128xf32> to vector<1x128xf32>
      %469 = vector.shape_cast %468 : vector<1x128xf32> to vector<128xf32>
      %470 = vector.shape_cast %469 : vector<128xf32> to vector<1x1x128xf32>
      %471 = vector.extract_strided_slice %194 {offsets = [4, 0], sizes = [1, 128], strides = [1, 1]} : vector<27x128xf32> to vector<1x128xf32>
      %472 = vector.shape_cast %471 : vector<1x128xf32> to vector<128xf32>
      %473 = vector.shape_cast %472 : vector<128xf32> to vector<1x1x128xf32>
      %474 = vector.extract_strided_slice %194 {offsets = [5, 0], sizes = [1, 128], strides = [1, 1]} : vector<27x128xf32> to vector<1x128xf32>
      %475 = vector.shape_cast %474 : vector<1x128xf32> to vector<128xf32>
      %476 = vector.shape_cast %475 : vector<128xf32> to vector<1x1x128xf32>
      %477 = vector.extract_strided_slice %194 {offsets = [6, 0], sizes = [1, 128], strides = [1, 1]} : vector<27x128xf32> to vector<1x128xf32>
      %478 = vector.shape_cast %477 : vector<1x128xf32> to vector<128xf32>
      %479 = vector.shape_cast %478 : vector<128xf32> to vector<1x1x128xf32>
      %480 = vector.extract_strided_slice %194 {offsets = [7, 0], sizes = [1, 128], strides = [1, 1]} : vector<27x128xf32> to vector<1x128xf32>
      %481 = vector.shape_cast %480 : vector<1x128xf32> to vector<128xf32>
      %482 = vector.shape_cast %481 : vector<128xf32> to vector<1x1x128xf32>
      %483 = vector.extract_strided_slice %194 {offsets = [8, 0], sizes = [1, 128], strides = [1, 1]} : vector<27x128xf32> to vector<1x128xf32>
      %484 = vector.shape_cast %483 : vector<1x128xf32> to vector<128xf32>
      %485 = vector.shape_cast %484 : vector<128xf32> to vector<1x1x128xf32>
      %486 = vector.extract_strided_slice %195 {offsets = [0, 0], sizes = [1, 128], strides = [1, 1]} : vector<3x128xf32> to vector<1x128xf32>
      %487 = vector.shape_cast %486 : vector<1x128xf32> to vector<128xf32>
      %488 = vector.shape_cast %487 : vector<128xf32> to vector<1x1x128xf32>
      %c0_i32_122 = arith.constant 0 : i32
      %c4_i32_123 = arith.constant 4 : i32
      %489 = arith.muli %c0_i32_122, %c4_i32_123 : i32
      %490 = vector.shape_cast %488 : vector<1x1x128xf32> to vector<1x1x128xf32>
      %491 = vector.broadcast %490 : vector<1x1x128xf32> to vector<4x4x128xf32>
      %c0_i32_124 = arith.constant 0 : i32
      %492 = arith.addi %489, %c0_i32_124 : i32
      %493 = arith.index_cast %492 : i32 to index
      %c7_125 = arith.constant 7 : index
      %c0_126 = arith.constant 0 : index
      %494 = vector.load %arg10[%493, %c7_125, %c0_126] : memref<6x16x128xf32, #tpu.memory_space<vmem>>, vector<4x6x128xf32>
      %495 = vector.extract_strided_slice %494 {offsets = [0, 0, 0], sizes = [4, 4, 128], strides = [1, 1, 1]} : vector<4x6x128xf32> to vector<4x4x128xf32>
      %496 = vector.broadcast %461 : vector<1x1x128xf32> to vector<4x4x128xf32>
      %497 = arith.mulf %496, %495 : vector<4x4x128xf32>
      %498 = arith.addf %491, %497 : vector<4x4x128xf32>
      %499 = vector.extract_strided_slice %494 {offsets = [0, 1, 0], sizes = [4, 4, 128], strides = [1, 1, 1]} : vector<4x6x128xf32> to vector<4x4x128xf32>
      %500 = vector.broadcast %464 : vector<1x1x128xf32> to vector<4x4x128xf32>
      %501 = arith.mulf %500, %499 : vector<4x4x128xf32>
      %502 = arith.addf %498, %501 : vector<4x4x128xf32>
      %503 = vector.extract_strided_slice %494 {offsets = [0, 2, 0], sizes = [4, 4, 128], strides = [1, 1, 1]} : vector<4x6x128xf32> to vector<4x4x128xf32>
      %504 = vector.broadcast %467 : vector<1x1x128xf32> to vector<4x4x128xf32>
      %505 = arith.mulf %504, %503 : vector<4x4x128xf32>
      %506 = arith.addf %502, %505 : vector<4x4x128xf32>
      %c1_i32_127 = arith.constant 1 : i32
      %507 = arith.addi %489, %c1_i32_127 : i32
      %508 = arith.index_cast %507 : i32 to index
      %c7_128 = arith.constant 7 : index
      %c0_129 = arith.constant 0 : index
      %509 = vector.load %arg10[%508, %c7_128, %c0_129] : memref<6x16x128xf32, #tpu.memory_space<vmem>>, vector<4x6x128xf32>
      %510 = vector.extract_strided_slice %509 {offsets = [0, 0, 0], sizes = [4, 4, 128], strides = [1, 1, 1]} : vector<4x6x128xf32> to vector<4x4x128xf32>
      %511 = vector.broadcast %470 : vector<1x1x128xf32> to vector<4x4x128xf32>
      %512 = arith.mulf %511, %510 : vector<4x4x128xf32>
      %513 = arith.addf %506, %512 : vector<4x4x128xf32>
      %514 = vector.extract_strided_slice %509 {offsets = [0, 1, 0], sizes = [4, 4, 128], strides = [1, 1, 1]} : vector<4x6x128xf32> to vector<4x4x128xf32>
      %515 = vector.broadcast %473 : vector<1x1x128xf32> to vector<4x4x128xf32>
      %516 = arith.mulf %515, %514 : vector<4x4x128xf32>
      %517 = arith.addf %513, %516 : vector<4x4x128xf32>
      %518 = vector.extract_strided_slice %509 {offsets = [0, 2, 0], sizes = [4, 4, 128], strides = [1, 1, 1]} : vector<4x6x128xf32> to vector<4x4x128xf32>
      %519 = vector.broadcast %476 : vector<1x1x128xf32> to vector<4x4x128xf32>
      %520 = arith.mulf %519, %518 : vector<4x4x128xf32>
      %521 = arith.addf %517, %520 : vector<4x4x128xf32>
      %c2_i32_130 = arith.constant 2 : i32
      %522 = arith.addi %489, %c2_i32_130 : i32
      %523 = arith.index_cast %522 : i32 to index
      %c7_131 = arith.constant 7 : index
      %c0_132 = arith.constant 0 : index
      %524 = vector.load %arg10[%523, %c7_131, %c0_132] : memref<6x16x128xf32, #tpu.memory_space<vmem>>, vector<4x6x128xf32>
      %525 = vector.extract_strided_slice %524 {offsets = [0, 0, 0], sizes = [4, 4, 128], strides = [1, 1, 1]} : vector<4x6x128xf32> to vector<4x4x128xf32>
      %526 = vector.broadcast %479 : vector<1x1x128xf32> to vector<4x4x128xf32>
      %527 = arith.mulf %526, %525 : vector<4x4x128xf32>
      %528 = arith.addf %521, %527 : vector<4x4x128xf32>
      %529 = vector.extract_strided_slice %524 {offsets = [0, 1, 0], sizes = [4, 4, 128], strides = [1, 1, 1]} : vector<4x6x128xf32> to vector<4x4x128xf32>
      %530 = vector.broadcast %482 : vector<1x1x128xf32> to vector<4x4x128xf32>
      %531 = arith.mulf %530, %529 : vector<4x4x128xf32>
      %532 = arith.addf %528, %531 : vector<4x4x128xf32>
      %533 = vector.extract_strided_slice %524 {offsets = [0, 2, 0], sizes = [4, 4, 128], strides = [1, 1, 1]} : vector<4x6x128xf32> to vector<4x4x128xf32>
      %534 = vector.broadcast %485 : vector<1x1x128xf32> to vector<4x4x128xf32>
      %535 = arith.mulf %534, %533 : vector<4x4x128xf32>
      %536 = arith.addf %532, %535 : vector<4x4x128xf32>
      %c1_i32_133 = arith.constant 1 : i32
      %537 = arith.addi %c1_i32_133, %489 : i32
      %538 = arith.index_cast %537 : i32 to index
      %c8_134 = arith.constant 8 : index
      %c0_135 = arith.constant 0 : index
      %539 = vector.load %arg11[%538, %c8_134, %c0_135] : memref<6x16x128xf32, #tpu.memory_space<vmem>>, vector<4x4x128xf32>
      tpu.vector_store %arg11[%538, %c8_134, %c0_135], %536 {strides = array<i32>} : memref<6x16x128xf32, #tpu.memory_space<vmem>>, vector<4x4x128xf32>,
      %c1_i32_136 = arith.constant 1 : i32
      %540 = vector.extract_strided_slice %194 {offsets = [9, 0], sizes = [1, 128], strides = [1, 1]} : vector<27x128xf32> to vector<1x128xf32>
      %541 = vector.shape_cast %540 : vector<1x128xf32> to vector<128xf32>
      %542 = vector.shape_cast %541 : vector<128xf32> to vector<1x1x128xf32>
      %543 = vector.extract_strided_slice %194 {offsets = [10, 0], sizes = [1, 128], strides = [1, 1]} : vector<27x128xf32> to vector<1x128xf32>
      %544 = vector.shape_cast %543 : vector<1x128xf32> to vector<128xf32>
      %545 = vector.shape_cast %544 : vector<128xf32> to vector<1x1x128xf32>
      %546 = vector.extract_strided_slice %194 {offsets = [11, 0], sizes = [1, 128], strides = [1, 1]} : vector<27x128xf32> to vector<1x128xf32>
      %547 = vector.shape_cast %546 : vector<1x128xf32> to vector<128xf32>
      %548 = vector.shape_cast %547 : vector<128xf32> to vector<1x1x128xf32>
      %549 = vector.extract_strided_slice %194 {offsets = [12, 0], sizes = [1, 128], strides = [1, 1]} : vector<27x128xf32> to vector<1x128xf32>
      %550 = vector.shape_cast %549 : vector<1x128xf32> to vector<128xf32>
      %551 = vector.shape_cast %550 : vector<128xf32> to vector<1x1x128xf32>
      %552 = vector.extract_strided_slice %194 {offsets = [13, 0], sizes = [1, 128], strides = [1, 1]} : vector<27x128xf32> to vector<1x128xf32>
      %553 = vector.shape_cast %552 : vector<1x128xf32> to vector<128xf32>
      %554 = vector.shape_cast %553 : vector<128xf32> to vector<1x1x128xf32>
      %555 = vector.extract_strided_slice %194 {offsets = [14, 0], sizes = [1, 128], strides = [1, 1]} : vector<27x128xf32> to vector<1x128xf32>
      %556 = vector.shape_cast %555 : vector<1x128xf32> to vector<128xf32>
      %557 = vector.shape_cast %556 : vector<128xf32> to vector<1x1x128xf32>
      %558 = vector.extract_strided_slice %194 {offsets = [15, 0], sizes = [1, 128], strides = [1, 1]} : vector<27x128xf32> to vector<1x128xf32>
      %559 = vector.shape_cast %558 : vector<1x128xf32> to vector<128xf32>
      %560 = vector.shape_cast %559 : vector<128xf32> to vector<1x1x128xf32>
      %561 = vector.extract_strided_slice %194 {offsets = [16, 0], sizes = [1, 128], strides = [1, 1]} : vector<27x128xf32> to vector<1x128xf32>
      %562 = vector.shape_cast %561 : vector<1x128xf32> to vector<128xf32>
      %563 = vector.shape_cast %562 : vector<128xf32> to vector<1x1x128xf32>
      %564 = vector.extract_strided_slice %194 {offsets = [17, 0], sizes = [1, 128], strides = [1, 1]} : vector<27x128xf32> to vector<1x128xf32>
      %565 = vector.shape_cast %564 : vector<1x128xf32> to vector<128xf32>
      %566 = vector.shape_cast %565 : vector<128xf32> to vector<1x1x128xf32>
      %567 = vector.extract_strided_slice %195 {offsets = [1, 0], sizes = [1, 128], strides = [1, 1]} : vector<3x128xf32> to vector<1x128xf32>
      %568 = vector.shape_cast %567 : vector<1x128xf32> to vector<128xf32>
      %569 = vector.shape_cast %568 : vector<128xf32> to vector<1x1x128xf32>
      %c0_i32_137 = arith.constant 0 : i32
      %c4_i32_138 = arith.constant 4 : i32
      %570 = arith.muli %c0_i32_137, %c4_i32_138 : i32
      %571 = vector.shape_cast %569 : vector<1x1x128xf32> to vector<1x1x128xf32>
      %572 = vector.broadcast %571 : vector<1x1x128xf32> to vector<4x4x128xf32>
      %c0_i32_139 = arith.constant 0 : i32
      %573 = arith.addi %570, %c0_i32_139 : i32
      %574 = arith.index_cast %573 : i32 to index
      %c7_140 = arith.constant 7 : index
      %c0_141 = arith.constant 0 : index
      %575 = vector.load %arg11[%574, %c7_140, %c0_141] : memref<6x16x128xf32, #tpu.memory_space<vmem>>, vector<4x6x128xf32>
      %576 = vector.extract_strided_slice %575 {offsets = [0, 0, 0], sizes = [4, 4, 128], strides = [1, 1, 1]} : vector<4x6x128xf32> to vector<4x4x128xf32>
      %577 = vector.broadcast %542 : vector<1x1x128xf32> to vector<4x4x128xf32>
      %578 = arith.mulf %577, %576 : vector<4x4x128xf32>
      %579 = arith.addf %572, %578 : vector<4x4x128xf32>
      %580 = vector.extract_strided_slice %575 {offsets = [0, 1, 0], sizes = [4, 4, 128], strides = [1, 1, 1]} : vector<4x6x128xf32> to vector<4x4x128xf32>
      %581 = vector.broadcast %545 : vector<1x1x128xf32> to vector<4x4x128xf32>
      %582 = arith.mulf %581, %580 : vector<4x4x128xf32>
      %583 = arith.addf %579, %582 : vector<4x4x128xf32>
      %584 = vector.extract_strided_slice %575 {offsets = [0, 2, 0], sizes = [4, 4, 128], strides = [1, 1, 1]} : vector<4x6x128xf32> to vector<4x4x128xf32>
      %585 = vector.broadcast %548 : vector<1x1x128xf32> to vector<4x4x128xf32>
      %586 = arith.mulf %585, %584 : vector<4x4x128xf32>
      %587 = arith.addf %583, %586 : vector<4x4x128xf32>
      %c1_i32_142 = arith.constant 1 : i32
      %588 = arith.addi %570, %c1_i32_142 : i32
      %589 = arith.index_cast %588 : i32 to index
      %c7_143 = arith.constant 7 : index
      %c0_144 = arith.constant 0 : index
      %590 = vector.load %arg11[%589, %c7_143, %c0_144] : memref<6x16x128xf32, #tpu.memory_space<vmem>>, vector<4x6x128xf32>
      %591 = vector.extract_strided_slice %590 {offsets = [0, 0, 0], sizes = [4, 4, 128], strides = [1, 1, 1]} : vector<4x6x128xf32> to vector<4x4x128xf32>
      %592 = vector.broadcast %551 : vector<1x1x128xf32> to vector<4x4x128xf32>
      %593 = arith.mulf %592, %591 : vector<4x4x128xf32>
      %594 = arith.addf %587, %593 : vector<4x4x128xf32>
      %595 = vector.extract_strided_slice %590 {offsets = [0, 1, 0], sizes = [4, 4, 128], strides = [1, 1, 1]} : vector<4x6x128xf32> to vector<4x4x128xf32>
      %596 = vector.broadcast %554 : vector<1x1x128xf32> to vector<4x4x128xf32>
      %597 = arith.mulf %596, %595 : vector<4x4x128xf32>
      %598 = arith.addf %594, %597 : vector<4x4x128xf32>
      %599 = vector.extract_strided_slice %590 {offsets = [0, 2, 0], sizes = [4, 4, 128], strides = [1, 1, 1]} : vector<4x6x128xf32> to vector<4x4x128xf32>
      %600 = vector.broadcast %557 : vector<1x1x128xf32> to vector<4x4x128xf32>
      %601 = arith.mulf %600, %599 : vector<4x4x128xf32>
      %602 = arith.addf %598, %601 : vector<4x4x128xf32>
      %c2_i32_145 = arith.constant 2 : i32
      %603 = arith.addi %570, %c2_i32_145 : i32
      %604 = arith.index_cast %603 : i32 to index
      %c7_146 = arith.constant 7 : index
      %c0_147 = arith.constant 0 : index
      %605 = vector.load %arg11[%604, %c7_146, %c0_147] : memref<6x16x128xf32, #tpu.memory_space<vmem>>, vector<4x6x128xf32>
      %606 = vector.extract_strided_slice %605 {offsets = [0, 0, 0], sizes = [4, 4, 128], strides = [1, 1, 1]} : vector<4x6x128xf32> to vector<4x4x128xf32>
      %607 = vector.broadcast %560 : vector<1x1x128xf32> to vector<4x4x128xf32>
      %608 = arith.mulf %607, %606 : vector<4x4x128xf32>
      %609 = arith.addf %602, %608 : vector<4x4x128xf32>
      %610 = vector.extract_strided_slice %605 {offsets = [0, 1, 0], sizes = [4, 4, 128], strides = [1, 1, 1]} : vector<4x6x128xf32> to vector<4x4x128xf32>
      %611 = vector.broadcast %563 : vector<1x1x128xf32> to vector<4x4x128xf32>
      %612 = arith.mulf %611, %610 : vector<4x4x128xf32>
      %613 = arith.addf %609, %612 : vector<4x4x128xf32>
      %614 = vector.extract_strided_slice %605 {offsets = [0, 2, 0], sizes = [4, 4, 128], strides = [1, 1, 1]} : vector<4x6x128xf32> to vector<4x4x128xf32>
      %615 = vector.broadcast %566 : vector<1x1x128xf32> to vector<4x4x128xf32>
      %616 = arith.mulf %615, %614 : vector<4x4x128xf32>
      %617 = arith.addf %613, %616 : vector<4x4x128xf32>
      %c1_i32_148 = arith.constant 1 : i32
      %618 = arith.addi %c1_i32_148, %570 : i32
      %619 = arith.index_cast %618 : i32 to index
      %c8_149 = arith.constant 8 : index
      %c0_150 = arith.constant 0 : index
      %620 = vector.load %arg10[%619, %c8_149, %c0_150] : memref<6x16x128xf32, #tpu.memory_space<vmem>>, vector<4x4x128xf32>
      tpu.vector_store %arg10[%619, %c8_149, %c0_150], %617 {strides = array<i32>} : memref<6x16x128xf32, #tpu.memory_space<vmem>>, vector<4x4x128xf32>,
      %c1_i32_151 = arith.constant 1 : i32
      %621 = vector.extract_strided_slice %194 {offsets = [18, 0], sizes = [1, 128], strides = [1, 1]} : vector<27x128xf32> to vector<1x128xf32>
      %622 = vector.shape_cast %621 : vector<1x128xf32> to vector<128xf32>
      %623 = vector.shape_cast %622 : vector<128xf32> to vector<1x1x128xf32>
      %624 = vector.extract_strided_slice %194 {offsets = [19, 0], sizes = [1, 128], strides = [1, 1]} : vector<27x128xf32> to vector<1x128xf32>
      %625 = vector.shape_cast %624 : vector<1x128xf32> to vector<128xf32>
      %626 = vector.shape_cast %625 : vector<128xf32> to vector<1x1x128xf32>
      %627 = vector.extract_strided_slice %194 {offsets = [20, 0], sizes = [1, 128], strides = [1, 1]} : vector<27x128xf32> to vector<1x128xf32>
      %628 = vector.shape_cast %627 : vector<1x128xf32> to vector<128xf32>
      %629 = vector.shape_cast %628 : vector<128xf32> to vector<1x1x128xf32>
      %630 = vector.extract_strided_slice %194 {offsets = [21, 0], sizes = [1, 128], strides = [1, 1]} : vector<27x128xf32> to vector<1x128xf32>
      %631 = vector.shape_cast %630 : vector<1x128xf32> to vector<128xf32>
      %632 = vector.shape_cast %631 : vector<128xf32> to vector<1x1x128xf32>
      %633 = vector.extract_strided_slice %194 {offsets = [22, 0], sizes = [1, 128], strides = [1, 1]} : vector<27x128xf32> to vector<1x128xf32>
      %634 = vector.shape_cast %633 : vector<1x128xf32> to vector<128xf32>
      %635 = vector.shape_cast %634 : vector<128xf32> to vector<1x1x128xf32>
      %636 = vector.extract_strided_slice %194 {offsets = [23, 0], sizes = [1, 128], strides = [1, 1]} : vector<27x128xf32> to vector<1x128xf32>
      %637 = vector.shape_cast %636 : vector<1x128xf32> to vector<128xf32>
      %638 = vector.shape_cast %637 : vector<128xf32> to vector<1x1x128xf32>
      %639 = vector.extract_strided_slice %194 {offsets = [24, 0], sizes = [1, 128], strides = [1, 1]} : vector<27x128xf32> to vector<1x128xf32>
      %640 = vector.shape_cast %639 : vector<1x128xf32> to vector<128xf32>
      %641 = vector.shape_cast %640 : vector<128xf32> to vector<1x1x128xf32>
      %642 = vector.extract_strided_slice %194 {offsets = [25, 0], sizes = [1, 128], strides = [1, 1]} : vector<27x128xf32> to vector<1x128xf32>
      %643 = vector.shape_cast %642 : vector<1x128xf32> to vector<128xf32>
      %644 = vector.shape_cast %643 : vector<128xf32> to vector<1x1x128xf32>
      %645 = vector.extract_strided_slice %194 {offsets = [26, 0], sizes = [1, 128], strides = [1, 1]} : vector<27x128xf32> to vector<1x128xf32>
      %646 = vector.shape_cast %645 : vector<1x128xf32> to vector<128xf32>
      %647 = vector.shape_cast %646 : vector<128xf32> to vector<1x1x128xf32>
      %648 = vector.extract_strided_slice %195 {offsets = [2, 0], sizes = [1, 128], strides = [1, 1]} : vector<3x128xf32> to vector<1x128xf32>
      %649 = vector.shape_cast %648 : vector<1x128xf32> to vector<128xf32>
      %650 = vector.shape_cast %649 : vector<128xf32> to vector<1x1x128xf32>
      %c0_i32_152 = arith.constant 0 : i32
      %c4_i32_153 = arith.constant 4 : i32
      %651 = arith.muli %c0_i32_152, %c4_i32_153 : i32
      %652 = vector.shape_cast %650 : vector<1x1x128xf32> to vector<1x1x128xf32>
      %653 = vector.broadcast %652 : vector<1x1x128xf32> to vector<4x4x128xf32>
      %c0_i32_154 = arith.constant 0 : i32
      %654 = arith.addi %651, %c0_i32_154 : i32
      %655 = arith.index_cast %654 : i32 to index
      %c7_155 = arith.constant 7 : index
      %c0_156 = arith.constant 0 : index
      %656 = vector.load %arg10[%655, %c7_155, %c0_156] : memref<6x16x128xf32, #tpu.memory_space<vmem>>, vector<4x6x128xf32>
      %657 = vector.extract_strided_slice %656 {offsets = [0, 0, 0], sizes = [4, 4, 128], strides = [1, 1, 1]} : vector<4x6x128xf32> to vector<4x4x128xf32>
      %658 = vector.broadcast %623 : vector<1x1x128xf32> to vector<4x4x128xf32>
      %659 = arith.mulf %658, %657 : vector<4x4x128xf32>
      %660 = arith.addf %653, %659 : vector<4x4x128xf32>
      %661 = vector.extract_strided_slice %656 {offsets = [0, 1, 0], sizes = [4, 4, 128], strides = [1, 1, 1]} : vector<4x6x128xf32> to vector<4x4x128xf32>
      %662 = vector.broadcast %626 : vector<1x1x128xf32> to vector<4x4x128xf32>
      %663 = arith.mulf %662, %661 : vector<4x4x128xf32>
      %664 = arith.addf %660, %663 : vector<4x4x128xf32>
      %665 = vector.extract_strided_slice %656 {offsets = [0, 2, 0], sizes = [4, 4, 128], strides = [1, 1, 1]} : vector<4x6x128xf32> to vector<4x4x128xf32>
      %666 = vector.broadcast %629 : vector<1x1x128xf32> to vector<4x4x128xf32>
      %667 = arith.mulf %666, %665 : vector<4x4x128xf32>
      %668 = arith.addf %664, %667 : vector<4x4x128xf32>
      %c1_i32_157 = arith.constant 1 : i32
      %669 = arith.addi %651, %c1_i32_157 : i32
      %670 = arith.index_cast %669 : i32 to index
      %c7_158 = arith.constant 7 : index
      %c0_159 = arith.constant 0 : index
      %671 = vector.load %arg10[%670, %c7_158, %c0_159] : memref<6x16x128xf32, #tpu.memory_space<vmem>>, vector<4x6x128xf32>
      %672 = vector.extract_strided_slice %671 {offsets = [0, 0, 0], sizes = [4, 4, 128], strides = [1, 1, 1]} : vector<4x6x128xf32> to vector<4x4x128xf32>
      %673 = vector.broadcast %632 : vector<1x1x128xf32> to vector<4x4x128xf32>
      %674 = arith.mulf %673, %672 : vector<4x4x128xf32>
      %675 = arith.addf %668, %674 : vector<4x4x128xf32>
      %676 = vector.extract_strided_slice %671 {offsets = [0, 1, 0], sizes = [4, 4, 128], strides = [1, 1, 1]} : vector<4x6x128xf32> to vector<4x4x128xf32>
      %677 = vector.broadcast %635 : vector<1x1x128xf32> to vector<4x4x128xf32>
      %678 = arith.mulf %677, %676 : vector<4x4x128xf32>
      %679 = arith.addf %675, %678 : vector<4x4x128xf32>
      %680 = vector.extract_strided_slice %671 {offsets = [0, 2, 0], sizes = [4, 4, 128], strides = [1, 1, 1]} : vector<4x6x128xf32> to vector<4x4x128xf32>
      %681 = vector.broadcast %638 : vector<1x1x128xf32> to vector<4x4x128xf32>
      %682 = arith.mulf %681, %680 : vector<4x4x128xf32>
      %683 = arith.addf %679, %682 : vector<4x4x128xf32>
      %c2_i32_160 = arith.constant 2 : i32
      %684 = arith.addi %651, %c2_i32_160 : i32
      %685 = arith.index_cast %684 : i32 to index
      %c7_161 = arith.constant 7 : index
      %c0_162 = arith.constant 0 : index
      %686 = vector.load %arg10[%685, %c7_161, %c0_162] : memref<6x16x128xf32, #tpu.memory_space<vmem>>, vector<4x6x128xf32>
      %687 = vector.extract_strided_slice %686 {offsets = [0, 0, 0], sizes = [4, 4, 128], strides = [1, 1, 1]} : vector<4x6x128xf32> to vector<4x4x128xf32>
      %688 = vector.broadcast %641 : vector<1x1x128xf32> to vector<4x4x128xf32>
      %689 = arith.mulf %688, %687 : vector<4x4x128xf32>
      %690 = arith.addf %683, %689 : vector<4x4x128xf32>
      %691 = vector.extract_strided_slice %686 {offsets = [0, 1, 0], sizes = [4, 4, 128], strides = [1, 1, 1]} : vector<4x6x128xf32> to vector<4x4x128xf32>
      %692 = vector.broadcast %644 : vector<1x1x128xf32> to vector<4x4x128xf32>
      %693 = arith.mulf %692, %691 : vector<4x4x128xf32>
      %694 = arith.addf %690, %693 : vector<4x4x128xf32>
      %695 = vector.extract_strided_slice %686 {offsets = [0, 2, 0], sizes = [4, 4, 128], strides = [1, 1, 1]} : vector<4x6x128xf32> to vector<4x4x128xf32>
      %696 = vector.broadcast %647 : vector<1x1x128xf32> to vector<4x4x128xf32>
      %697 = arith.mulf %696, %695 : vector<4x4x128xf32>
      %698 = arith.addf %694, %697 : vector<4x4x128xf32>
      %c1_i32_163 = arith.constant 1 : i32
      %699 = arith.addi %c1_i32_163, %651 : i32
      %700 = arith.index_cast %699 : i32 to index
      %c8_164 = arith.constant 8 : index
      %c0_165 = arith.constant 0 : index
      %701 = vector.load %arg11[%700, %c8_164, %c0_165] : memref<6x16x128xf32, #tpu.memory_space<vmem>>, vector<4x4x128xf32>
      tpu.vector_store %arg11[%700, %c8_164, %c0_165], %698 {strides = array<i32>} : memref<6x16x128xf32, #tpu.memory_space<vmem>>, vector<4x4x128xf32>,
      %c1_i32_166 = arith.constant 1 : i32
      %cst_167 = arith.constant 0.000000e+00 : f32
      %702 = vector.broadcast %cst_167 : f32 to vector<1x128xf32>
      %c0_i32_168 = arith.constant 0 : i32
      %c4_i32_169 = arith.constant 4 : i32
      %703 = arith.muli %c0_i32_168, %c4_i32_169 : i32
      %c1_i32_170 = arith.constant 1 : i32
      %704 = arith.addi %c1_i32_170, %703 : i32
      %705 = arith.index_cast %704 : i32 to index
      %c8_171 = arith.constant 8 : index
      %c0_172 = arith.constant 0 : index
      %706 = vector.load %arg11[%705, %c8_171, %c0_172] : memref<6x16x128xf32, #tpu.memory_space<vmem>>, vector<4x4x128xf32>
      %cst_173 = arith.constant dense<0.000000e+00> : vector<4x128xf32>
      %707 = vector.multi_reduction <add>, %706, %cst_173 [0] : vector<4x4x128xf32> to vector<4x128xf32>
      %cst_174 = arith.constant dense<0.000000e+00> : vector<128xf32>
      %708 = vector.multi_reduction <add>, %707, %cst_174 [0] : vector<4x128xf32> to vector<128xf32>
      %709 = vector.shape_cast %708 : vector<128xf32> to vector<1x128xf32>
      %710 = arith.addf %702, %709 : vector<1x128xf32>
      %c1_i32_175 = arith.constant 1 : i32
      %cst_176 = arith.constant 6.250000e-02 : f32
      %711 = vector.broadcast %cst_176 : f32 to vector<1x128xf32>
      %712 = arith.mulf %710, %711 : vector<1x128xf32>
      %c0_177 = arith.constant 0 : index
      %c0_178 = arith.constant 0 : index
      %713 = vector.load %arg7[%c0_177, %c0_178] : memref<1x128xf32, #tpu.memory_space<vmem>>, vector<1x128xf32>
      tpu.vector_store %arg7[%c0_177, %c0_178], %712 {strides = array<i32>} : memref<1x128xf32, #tpu.memory_space<vmem>>, vector<1x128xf32>,
    } else {
    }
    return
  }
  func.func @transform_0(%arg0: i32, %arg1: i32) -> (i32, i32, i32, i32, i32) {
    %c0_i32 = arith.constant 0 : i32
    %c0_i32_0 = arith.constant 0 : i32
    %c0_i32_1 = arith.constant 0 : i32
    %c0_i32_2 = arith.constant 0 : i32
    return %arg0, %arg1, %c0_i32, %c0_i32_0, %c0_i32_1 : i32, i32, i32, i32, i32
  }
  func.func @transform_1(%arg0: i32, %arg1: i32) -> (i32, i32) {
    %c0_i32 = arith.constant 0 : i32
    %c0_i32_0 = arith.constant 0 : i32
    return %c0_i32, %arg0 : i32, i32
  }
  func.func @transform_2(%arg0: i32, %arg1: i32) -> (i32, i32) {
    %c0_i32 = arith.constant 0 : i32
    %c0_i32_0 = arith.constant 0 : i32
    return %c0_i32, %arg0 : i32, i32
  }
  func.func @transform_3(%arg0: i32, %arg1: i32) -> (i32, i32) {
    %c0_i32 = arith.constant 0 : i32
    %c0_i32_0 = arith.constant 0 : i32
    return %c0_i32, %arg0 : i32, i32
  }
  func.func @transform_4(%arg0: i32, %arg1: i32) -> (i32, i32) {
    %c0_i32 = arith.constant 0 : i32
    %c0_i32_0 = arith.constant 0 : i32
    return %c0_i32, %arg0 : i32, i32
  }
  func.func @transform_5(%arg0: i32, %arg1: i32) -> (i32, i32) {
    %c0_i32 = arith.constant 0 : i32
    %c0_i32_0 = arith.constant 0 : i32
    return %c0_i32, %arg0 : i32, i32
  }
}

</mosaic_0001>

<llo_original>
// kernel: tile.26
$region0: #{tile.26}
  %s0 = inlined_call_operand.vmem [shape: f32[3,2,4], index: 0, kind: input, shape index: {}]
  %s1 = inlined_call_operand.vmem [shape: f32[3,8], index: 1, kind: output, shape index: {}]
  $region1: #{tile.26} parent=0
    #allocation0 [shape = 'u8[4096]{0}', space=vmem, size = 0x1000, scoped, tag = 'scoped mem for output reshape']
    #allocation1 [shape = 'u8[12288]{0}', space=vmem, size = 0x3000, scoped, tag = 'scoped mem for input reshape']
    %s3 = ssub.s32 4, 1
    %s4 = scalar_lea.vmem %s0, 4
    %v5 = vld [vmem:[%s4] sm:%s3]
    %s6 = scalar_lea.vmem [#allocation1], 16
    %7 = vst [vmem:[%s6] sm:%s3] %v5
    %s8 = scalar_lea.vmem %s0, 2
    %v9 = vld [vmem:[%s8] sm:%s3]
    %s10 = scalar_lea.vmem [#allocation1], 8
    %11 = vst [vmem:[%s10] sm:%s3] %v9
    %v12 = vld [vmem:[%s0] sm:%s3]
    %13 = vst [vmem:[#allocation1] sm:%s3] %v12
    %v14 = vld [vmem:[#allocation1] ss:$8 sm:$0x7]
    %vm15 = vcmask 31744
    %16 = vst.msk [vmem:[#allocation0] sm:$0x7] %vm15, %v14
    %s17 = scalar_lea.vmem [#allocation1], 1
    %v18 = vld [vmem:[%s17] ss:$8 sm:$0x7]
    %19 = vrot.lane.b32.xlu0 %v18, 4
    %v20 = vpop.permute.xlu0 %19
    %vm21 = vcmask 64544
    %22 = vst.msk [vmem:[#allocation0] sm:$0x7] %vm21, %v20
    %s24 = ssub.s32 16, 1
    %v25 = vld [vmem:[#allocation0] sm:%s24]
    %s27 = ssub.s32 16, 1
    %28 = vst [vmem:[%s1] sm:%s27] %v25

// kernel: squeeze.1
$region0: #{squeeze.1}
  %s0 = inlined_call_operand.vmem [shape: f32[8], index: 0, kind: input, shape index: {}]
  %s1 = inlined_call_operand.vmem [shape: f32[2,4], index: 1, kind: output, shape index: {}]
  $region1: #{squeeze.1} parent=0
    #allocation0 [shape = 'u8[4096]{0}', space=vmem, size = 0x1000, scoped, tag = 'scoped mem for output reshape']
    #allocation1 [shape = 'u8[4096]{0}', space=vmem, size = 0x1000, scoped, tag = 'scoped mem for input reshape']
    %s3 = ssub.s32 2, 1
    %v4 = vld [vmem:[%s0] sm:%s3]
    %5 = vst [vmem:[#allocation1] sm:%s3] %v4
    %v6 = vld [vmem:[#allocation1] sm:$0x1]
    %vm7 = vcmask 31744
    %8 = vst.msk [vmem:[#allocation0] sm:$0x1] %vm7, %v6
    %v9 = vld [vmem:[#allocation1] sm:$0x1]
    %10 = vrot.lane.b32.xlu0 %v9, 124
    %v11 = vpop.permute.xlu0 %10
    %vm12 = vcmask 31744
    %s13 = scalar_lea.vmem [#allocation0], 1
    %14 = vst.msk [vmem:[%s13] sm:$0x1] %vm12, %v11
    %s16 = ssub.s32 4, 1
    %v17 = vld [vmem:[#allocation0] sm:%s16]
    %s19 = ssub.s32 4, 1
    %20 = vst [vmem:[%s1] sm:%s19] %v17

</llo_original>
